<compile_context>
chip_gen: v5e
topology: v5e:2x2
jax: 0.10.0
libtpu: 0.0.40
codegen_flags: <defaults>
</compile_context>

<pallas_src>
import functools

import jax
import jax.numpy as jnp
from jax.experimental import pallas as pl
from jax.experimental.pallas import tpu as pltpu


# ---------------------------------------------------------------------------
# Pallas kernel: feature MLP + attention scores + online-softmax partials
# ---------------------------------------------------------------------------
def _dattention_kernel(
    # ---- scalar prefetch ---------------------------------------------------
    nvalid_ref,   # (1,) int32 SMEM : number of real (non-padded) instances
    # ---- inputs -------------------------------------------------------------
    x_ref,        # (TILE_N, Din)  bf16   streamed per grid step
    w1_ref,       # (Din, L)       bf16   VMEM-resident
    b1_ref,       # (1, L)         f32
    wa_ref,       # (L, D)         bf16
    ba_ref,       # (1, D)         f32
    wbr_ref,      # (1, D)         f32    (Wb stored as a row; K == 1)
    bb_ref,       # (1, 1)         f32
    # ---- outputs ------------------------------------------------------------
    attn_ref,     # (1, TILE_N)            lane-dense pre-softmax scores
    m_ref,        # (1, 1, 128)            per-split running max   (last step)
    l_ref,        # (1, 1, 128)            per-split softmax denom (last step)
    acc_ref,      # (1, 1, L)              per-split weighted-feature accum
    # ---- scratch ------------------------------------------------------------
    m_sc,         # (1, 1)  f32 running max
    l_sc,         # (1, 1)  f32 running denominator
    acc_sc,       # (1, L)  f32 running accumulator
):
    s_idx = pl.program_id(0)                  # split index (parallel axis)
    i_idx = pl.program_id(1)                  # tile index inside the split
    tiles_per_split = pl.num_programs(1)
    tile_n = x_ref.shape[0]
    n_valid = nvalid_ref[0]

    @pl.when(i_idx == 0)
    def _init():
        m_sc[...] = jnp.full_like(m_sc, -jnp.inf)
        l_sc[...] = jnp.zeros_like(l_sc)
        acc_sc[...] = jnp.zeros_like(acc_sc)

    # feature = ReLU(x @ W1 + b1)   (Dropout is identity at inference)
    feat = jnp.dot(x_ref[...], w1_ref[...], preferred_element_type=jnp.float32)
    feat = jnp.maximum(feat + b1_ref[...], 0.0)                      # (TILE_N, L) f32
    feat_bf = feat.astype(jnp.bfloat16)                              # reused twice below

    # attention hidden: tanh(feature @ Wa + ba)
    h = jnp.tanh(
        jnp.dot(feat_bf, wa_ref[...], preferred_element_type=jnp.float32)
        + ba_ref[...]
    )                                                                # (TILE_N, D) f32

    # attention score (K == 1): VPU multiply + lane reduce, then a single
    # relayout to the lane-dense (1, TILE_N) row reused for everything below.
    s_col = jnp.sum(h * wbr_ref[...], axis=-1, keepdims=True) + bb_ref[...]   # (TILE_N, 1)
    s_row = jnp.reshape(s_col, (1, tile_n))                                   # (1, TILE_N)

    # lane-dense store of pre-softmax scores (A_ori)
    attn_ref[...] = s_row

    # ----- online softmax, entirely lane-dense -----------------------------
    lane = jax.lax.broadcasted_iota(jnp.int32, (1, tile_n), 1)
    row = (s_idx * tiles_per_split + i_idx) * tile_n + lane
    s_m = jnp.where(row < n_valid, s_row, -1e30)                     # mask padded lanes (f32)

    tile_max = jnp.max(s_m, axis=-1, keepdims=True)                  # (1, 1) lane reduce
    m_new = jnp.maximum(m_sc[...], tile_max)
    alpha = jnp.exp(m_sc[...] - m_new)
    p_row = jnp.exp(s_m - m_new)                                     # (1, TILE_N) f32

    l_sc[...] = alpha * l_sc[...] + jnp.sum(p_row, axis=-1, keepdims=True)
    # weighted-feature accumulation on the MXU: (1, TILE_N) @ (TILE_N, L)
    acc_sc[...] = alpha * acc_sc[...] + jnp.dot(
        p_row.astype(jnp.bfloat16), feat_bf, preferred_element_type=jnp.float32)
    m_sc[...] = m_new

    @pl.when(i_idx == tiles_per_split - 1)
    def _finalize():
        m_ref[...] = jnp.broadcast_to(jnp.reshape(m_sc[...], (1, 1, 1)), (1, 1, 128))
        l_ref[...] = jnp.broadcast_to(jnp.reshape(l_sc[...], (1, 1, 1)), (1, 1, 128))
        acc_ref[...] = jnp.reshape(acc_sc[...], (1, 1, acc_sc.shape[-1]))


# ---------------------------------------------------------------------------
# Wrapper
# ---------------------------------------------------------------------------
@functools.partial(jax.jit, static_argnames=("tile_n", "n_split"))
def dattention_forward(x1, params, *, tile_n=1024, n_split=2):
    """x1: (1, N, Din) or (N, Din). Returns (logits, Y_hat, Y_prob, results_dict)."""
    x = x1.reshape(-1, x1.shape[-1])                                  # squeeze(0) equivalent
    N, Din = x.shape
    L = params["w1"].shape[1]
    D = params["wa"].shape[1]
    C = params["wc"].shape[1]

    # Bucketed padding: round the tile count up to a multiple of n_split so one
    # compiled kernel (with runtime n_valid) covers the whole bucket.
    n_tiles = n_split * pl.cdiv(pl.cdiv(N, tile_n), n_split)
    tiles_per_split = n_tiles // n_split
    n_pad = n_tiles * tile_n

    # Single fused pass over x: zero-pad + cast to bf16 (padded rows are masked
    # in-kernel through n_valid; zero padding keeps feat finite).
    x_pad = jnp.pad(x, ((0, n_pad - N), (0, 0))).astype(jnp.bfloat16)

    n_valid = jnp.full((1,), N, jnp.int32)                            # scalar prefetch

    const2 = lambda s, i, nv: (0, 0)   # weights / biases stay VMEM-resident

    attn_lane, m_part, l_part, acc_part = pl.pallas_call(
        _dattention_kernel,
        out_shape=(
            jax.ShapeDtypeStruct((1, n_pad), jnp.float32),            # A_ori (lane-dense)
            jax.ShapeDtypeStruct((n_split, 1, 128), jnp.float32),     # per-split max
            jax.ShapeDtypeStruct((n_split, 1, 128), jnp.float32),     # per-split denom
            jax.ShapeDtypeStruct((n_split, 1, L), jnp.float32),       # per-split accumulator
        ),
        grid_spec=pltpu.PrefetchScalarGridSpec(
            num_scalar_prefetch=1,
            grid=(n_split, tiles_per_split),
            in_specs=[
                pl.BlockSpec((tile_n, Din),
                             lambda s, i, nv: (s * tiles_per_split + i, 0)),  # x streams
                pl.BlockSpec((Din, L), const2),                       # W1 (bf16)
                pl.BlockSpec((1, L), const2),                         # b1
                pl.BlockSpec((L, D), const2),                         # Wa (bf16)
                pl.BlockSpec((1, D), const2),                         # ba
                pl.BlockSpec((1, D), const2),                         # Wb row
                pl.BlockSpec((1, 1), const2),                         # bb
            ],
            out_specs=(
                pl.BlockSpec((1, tile_n),
                             lambda s, i, nv: (0, s * tiles_per_split + i)),
                pl.BlockSpec((1, 1, 128), lambda s, i, nv: (s, 0, 0)),
                pl.BlockSpec((1, 1, 128), lambda s, i, nv: (s, 0, 0)),
                pl.BlockSpec((1, 1, L), lambda s, i, nv: (s, 0, 0)),
            ),
            scratch_shapes=[
                pltpu.VMEM((1, 1), jnp.float32),                      # running max m
                pltpu.VMEM((1, 1), jnp.float32),                      # running denom l
                pltpu.VMEM((1, L), jnp.float32),                      # accumulator
            ],
        ),
        compiler_params=pltpu.CompilerParams(
            # leading split axis can be sharded across the two v7x TensorCores;
            # the inner online-softmax axis stays sequential.
            dimension_semantics=("parallel", "arbitrary"),
            vmem_limit_bytes=64 * 1024 * 1024,
        ),
        cost_estimate=pl.CostEstimate(
            flops=2 * n_pad * (Din * L + L * D + D + L) + 2 * L * C,
            transcendentals=n_pad * (D + 1),
            bytes_accessed=(n_pad * Din * 2                           # x (bf16)
                            + (Din * L + L * D) * 2                   # bf16 weights
                            + (L + 2 * D + 1) * 4                     # f32 biases / Wb row
                            + (n_pad + n_split * (2 * 128 + L)) * 4), # outputs
        ),
    )(
        n_valid,
        x_pad,
        params["w1"].astype(jnp.bfloat16), params["b1"],
        params["wa"].astype(jnp.bfloat16), params["ba"],
        params["wb"].T,                                               # (K=1, D) row
        params["bb"],
    )

    # ---- merge per-split online-softmax partials (log-sum-exp) -------------
    m_p = m_part[:, 0, 0]                                             # (n_split,)
    l_p = l_part[:, 0, 0]                                             # (n_split,)
    acc_p = acc_part[:, 0, :]                                         # (n_split, L)
    m_g = jnp.max(m_p)
    scale = jnp.exp(m_p - m_g)                                        # (n_split,)
    l_g = jnp.sum(scale * l_p)
    slide = jnp.sum(scale[:, None] * acc_p, axis=0, keepdims=True) / l_g   # (1, L)

    # classifier (tiny; done in the wrapper)
    logits = jnp.dot(slide, params["wc"], preferred_element_type=jnp.float32) + params["bc"]

    attn = attn_lane[:, :N].T                                         # (N, K=1) == A_ori
    y_hat = jnp.argmax(logits)                                        # torch.argmax(x): flat argmax
    y_prob = jax.nn.softmax(logits, axis=-1)                          # F.softmax(x) on 2-D -> dim=1
    results_dict = {"patch_attn": attn, "slide_feat": slide}
    return logits, y_hat, y_prob, results_dict


# ---------------------------------------------------------------------------
# Deterministic parameter init (mirrors initialize_weights: xavier_normal, bias=0)
# ---------------------------------------------------------------------------
def init_params(key, input_dim, n_classes, L=512, D=128, K=1):
    def xavier_normal(k, fan_in, fan_out):
        std = jnp.sqrt(2.0 / (fan_in + fan_out))
        return jax.random.normal(k, (fan_in, fan_out), jnp.float32) * std

    k1, k2, k3, k4 = jax.random.split(key, 4)
    return {
        "w1": xavier_normal(k1, input_dim, L), "b1": jnp.zeros((1, L), jnp.float32),
        "wa": xavier_normal(k2, L, D),         "ba": jnp.zeros((1, D), jnp.float32),
        "wb": xavier_normal(k3, D, K),         "bb": jnp.zeros((1, K), jnp.float32),
        "wc": xavier_normal(k4, L, n_classes), "bc": jnp.zeros((1, n_classes), jnp.float32),
    }


def _reference(x1, params):
    """Pure-JAX reference with matching bf16 matmul inputs / f32 accumulation."""
    xf = x1.reshape(-1, x1.shape[-1])
    w1_bf = params["w1"].astype(jnp.bfloat16)
    wa_bf = params["wa"].astype(jnp.bfloat16)
    feat = jax.nn.relu(
        jnp.dot(xf.astype(jnp.bfloat16), w1_bf, preferred_element_type=jnp.float32)
        + params["b1"])
    h = jnp.tanh(
        jnp.dot(feat.astype(jnp.bfloat16), wa_bf, preferred_element_type=jnp.float32)
        + params["ba"])
    a = jnp.sum(h * params["wb"].T, axis=-1, keepdims=True) + params["bb"]    # (N, 1)
    w = jax.nn.softmax(a.T, axis=-1)                                          # (1, N)
    M = jnp.sum(w.T * feat, axis=0, keepdims=True)                            # (1, L)
    logits = jnp.dot(M, params["wc"], preferred_element_type=jnp.float32) + params["bc"]
    return a, M, logits


if __name__ == "__main__":
    # Small bag, deliberately NOT a multiple of the tile size so padding masks,
    # multi-step online softmax and the cross-split merge are all exercised:
    # 300 = 2*128 + 44, split 2-ways.
    N, INPUT_DIM, N_CLASSES = 300, 64, 2

    key = jax.random.PRNGKey(0)
    k_x, k_p = jax.random.split(key)
    x1 = jax.random.normal(k_x, (1, N, INPUT_DIM), jnp.float32)
    params = init_params(k_p, INPUT_DIM, N_CLASSES)

    a_ref, M_ref, logits_ref = _reference(x1, params)

    ok = True
    for tn in (128, 512):   # 512 makes the second split entirely padding (merge path)
        logits, y_hat, y_prob, results = dattention_forward(
            x1, params, tile_n=tn, n_split=2)
        jax.block_until_ready((logits, y_hat, y_prob, results))

        ok &= bool(jnp.allclose(results["patch_attn"], a_ref, atol=2e-2, rtol=2e-2))
        ok &= bool(jnp.allclose(results["slide_feat"], M_ref, atol=2e-2, rtol=2e-2))
        ok &= bool(jnp.allclose(logits, logits_ref, atol=2e-2, rtol=2e-2))
        ok &= y_prob.shape == (1, N_CLASSES)
        ok &= bool(jnp.all(jnp.isfinite(logits)))

    assert ok, "mismatch vs pure-JAX reference"
    print("KERNEL_OK")
</pallas_src>

<mosaic_0001>
module attributes {stable_mosaic.version = 11 : i64} {
  func.func @_dattention_kernel(%arg0: i32, %arg1: i32, %arg2: memref<1xi32, #tpu.memory_space<smem>>, %arg3: memref<128x64xbf16, #tpu.memory_space<vmem>>, %arg4: memref<64x512xbf16, #tpu.memory_space<vmem>>, %arg5: memref<1x512xf32, #tpu.memory_space<vmem>>, %arg6: memref<512x128xbf16, #tpu.memory_space<vmem>>, %arg7: memref<1x128xf32, #tpu.memory_space<vmem>>, %arg8: memref<1x128xf32, #tpu.memory_space<vmem>>, %arg9: memref<1x1xf32, #tpu.memory_space<vmem>>, %arg10: memref<1x128xf32, #tpu.memory_space<vmem>>, %arg11: memref<1x1x128xf32, #tpu.memory_space<vmem>>, %arg12: memref<1x1x128xf32, #tpu.memory_space<vmem>>, %arg13: memref<1x1x512xf32, #tpu.memory_space<vmem>>, %arg14: memref<1x1xf32, #tpu.memory_space<vmem>>, %arg15: memref<1x1xf32, #tpu.memory_space<vmem>>, %arg16: memref<1x512xf32, #tpu.memory_space<vmem>>) attributes {dimension_semantics = [#tpu.dimension_semantics<parallel>, #tpu.dimension_semantics<arbitrary>], iteration_bounds = array<i64: 2, 2>, scalar_prefetch = 1 : i64, scratch_operands = 3 : i64, tpu.core_type = #tpu.core_type<tc>, window_params = [{transform_indices = @transform_0, window_bounds = array<i64: 128, 64>}, {pipeline_mode = #tpu.pipeline_mode<synchronous>, transform_indices = @transform_1, window_bounds = array<i64: 64, 512>}, {pipeline_mode = #tpu.pipeline_mode<synchronous>, transform_indices = @transform_2, window_bounds = array<i64: 1, 512>}, {pipeline_mode = #tpu.pipeline_mode<synchronous>, transform_indices = @transform_3, window_bounds = array<i64: 512, 128>}, {pipeline_mode = #tpu.pipeline_mode<synchronous>, transform_indices = @transform_4, window_bounds = array<i64: 1, 128>}, {pipeline_mode = #tpu.pipeline_mode<synchronous>, transform_indices = @transform_5, window_bounds = array<i64: 1, 128>}, {pipeline_mode = #tpu.pipeline_mode<synchronous>, transform_indices = @transform_6, window_bounds = array<i64: 1, 1>}, {transform_indices = @transform_7, window_bounds = array<i64: 1, 128>}, {transform_indices = @transform_8, window_bounds = array<i64: 1, 1, 128>}, {transform_indices = @transform_9, window_bounds = array<i64: 1, 1, 128>}, {transform_indices = @transform_10, window_bounds = array<i64: 1, 1, 512>}]} {
    %c0 = arith.constant 0 : index
    %0 = memref.load %arg2[%c0] : memref<1xi32, #tpu.memory_space<smem>>
    %c0_i32 = arith.constant 0 : i32
    %1 = arith.cmpi eq, %arg1, %c0_i32 : i32
    %2 = arith.extui %1 : i1 to i32
    %c0_i32_0 = arith.constant 0 : i32
    %3 = arith.cmpi ne, %2, %c0_i32_0 : i32
    scf.if %3 {
      %cst_39 = arith.constant 0xFF800000 : f32
      %66 = vector.broadcast %cst_39 : f32 to vector<1x1xf32>
      %c0_40 = arith.constant 0 : index
      %c0_41 = arith.constant 0 : index
      %67 = vector.load %arg14[%c0_40, %c0_41] : memref<1x1xf32, #tpu.memory_space<vmem>>, vector<1x1xf32>
      tpu.vector_store %arg14[%c0_40, %c0_41], %66 {strides = array<i32>} : memref<1x1xf32, #tpu.memory_space<vmem>>, vector<1x1xf32>,
      %cst_42 = arith.constant 0.000000e+00 : f32
      %68 = vector.broadcast %cst_42 : f32 to vector<1x1xf32>
      %c0_43 = arith.constant 0 : index
      %c0_44 = arith.constant 0 : index
      %69 = vector.load %arg15[%c0_43, %c0_44] : memref<1x1xf32, #tpu.memory_space<vmem>>, vector<1x1xf32>
      tpu.vector_store %arg15[%c0_43, %c0_44], %68 {strides = array<i32>} : memref<1x1xf32, #tpu.memory_space<vmem>>, vector<1x1xf32>,
      %cst_45 = arith.constant 0.000000e+00 : f32
      %70 = vector.broadcast %cst_45 : f32 to vector<1x512xf32>
      %c0_46 = arith.constant 0 : index
      %c0_47 = arith.constant 0 : index
      %71 = vector.load %arg16[%c0_46, %c0_47] : memref<1x512xf32, #tpu.memory_space<vmem>>, vector<1x512xf32>
      tpu.vector_store %arg16[%c0_46, %c0_47], %70 {strides = array<i32>} : memref<1x512xf32, #tpu.memory_space<vmem>>, vector<1x512xf32>,
    } else {
    }
    %c0_1 = arith.constant 0 : index
    %c0_2 = arith.constant 0 : index
    %4 = vector.load %arg3[%c0_1, %c0_2] : memref<128x64xbf16, #tpu.memory_space<vmem>>, vector<128x64xbf16>
    %c0_3 = arith.constant 0 : index
    %c0_4 = arith.constant 0 : index
    %5 = vector.load %arg4[%c0_3, %c0_4] : memref<64x512xbf16, #tpu.memory_space<vmem>>, vector<64x512xbf16>
    %cst = arith.constant dense<0.000000e+00> : vector<128x512xf32>
    %6 = tpu.matmul %4, %5, %cst {dimension_numbers = #tpu.dot_dimension_numbers<[1], [0], [0], [1], [0, 0, 1, 1], [], []>} : vector<128x64xbf16>, vector<64x512xbf16>, vector<128x512xf32> -> vector<128x512xf32>
    %c0_5 = arith.constant 0 : index
    %c0_6 = arith.constant 0 : index
    %7 = vector.load %arg5[%c0_5, %c0_6] : memref<1x512xf32, #tpu.memory_space<vmem>>, vector<1x512xf32>
    %8 = vector.broadcast %7 : vector<1x512xf32> to vector<128x512xf32>
    %9 = arith.addf %6, %8 : vector<128x512xf32>
    %cst_7 = arith.constant 0.000000e+00 : f32
    %10 = vector.broadcast %cst_7 : f32 to vector<128x512xf32>
    %11 = arith.maximumf %9, %10 : vector<128x512xf32>
    %12 = arith.truncf %11 : vector<128x512xf32> to vector<128x512xbf16>
    %c0_8 = arith.constant 0 : index
    %c0_9 = arith.constant 0 : index
    %13 = vector.load %arg6[%c0_8, %c0_9] : memref<512x128xbf16, #tpu.memory_space<vmem>>, vector<512x128xbf16>
    %cst_10 = arith.constant dense<0.000000e+00> : vector<128x128xf32>
    %14 = tpu.matmul %12, %13, %cst_10 {dimension_numbers = #tpu.dot_dimension_numbers<[1], [0], [0], [1], [0, 0, 1, 1], [], []>} : vector<128x512xbf16>, vector<512x128xbf16>, vector<128x128xf32> -> vector<128x128xf32>
    %c0_11 = arith.constant 0 : index
    %c0_12 = arith.constant 0 : index
    %15 = vector.load %arg7[%c0_11, %c0_12] : memref<1x128xf32, #tpu.memory_space<vmem>>, vector<1x128xf32>
    %16 = vector.broadcast %15 : vector<1x128xf32> to vector<128x128xf32>
    %17 = arith.addf %14, %16 : vector<128x128xf32>
    %18 = math.tanh %17 : vector<128x128xf32>
    %c0_13 = arith.constant 0 : index
    %c0_14 = arith.constant 0 : index
    %19 = vector.load %arg8[%c0_13, %c0_14] : memref<1x128xf32, #tpu.memory_space<vmem>>, vector<1x128xf32>
    %20 = vector.broadcast %19 : vector<1x128xf32> to vector<128x128xf32>
    %21 = arith.mulf %18, %20 : vector<128x128xf32>
    %cst_15 = arith.constant dense<0.000000e+00> : vector<128xf32>
    %22 = vector.multi_reduction <add>, %21, %cst_15 [1] : vector<128x128xf32> to vector<128xf32>
    %23 = vector.shape_cast %22 : vector<128xf32> to vector<128x1xf32>
    %c0_16 = arith.constant 0 : index
    %c0_17 = arith.constant 0 : index
    %24 = vector.load %arg9[%c0_16, %c0_17] : memref<1x1xf32, #tpu.memory_space<vmem>>, vector<1x1xf32>
    %25 = vector.broadcast %24 : vector<1x1xf32> to vector<128x1xf32>
    %26 = arith.addf %23, %25 : vector<128x1xf32>
    %27 = vector.shape_cast %26 : vector<128x1xf32> to vector<1x128xf32>
    %c0_18 = arith.constant 0 : index
    %c0_19 = arith.constant 0 : index
    %28 = vector.load %arg10[%c0_18, %c0_19] : memref<1x128xf32, #tpu.memory_space<vmem>>, vector<1x128xf32>
    tpu.vector_store %arg10[%c0_18, %c0_19], %27 {strides = array<i32>} : memref<1x128xf32, #tpu.memory_space<vmem>>, vector<1x128xf32>,
    %29 = tpu.iota {dimensions = array<i32: 1>} : vector<1x128xi32>
    %c2_i32 = arith.constant 2 : i32
    %30 = arith.muli %arg0, %c2_i32 : i32
    %31 = arith.addi %30, %arg1 : i32
    %c128_i32 = arith.constant 128 : i32
    %32 = arith.muli %31, %c128_i32 : i32
    %33 = vector.broadcast %32 : i32 to vector<1x128xi32>
    %34 = arith.addi %33, %29 : vector<1x128xi32>
    %35 = vector.broadcast %0 : i32 to vector<1x128xi32>
    %36 = arith.cmpi slt, %34, %35 : vector<1x128xi32>
    %cst_20 = arith.constant -1.000000e+30 : f32
    %37 = vector.broadcast %cst_20 : f32 to vector<1x128xf32>
    %38 = arith.select %36, %27, %37 : vector<1x128xi1>, vector<1x128xf32>
    %cst_21 = arith.constant dense<0xFF800000> : vector<1xf32>
    %39 = vector.multi_reduction <maximumf>, %38, %cst_21 [1] : vector<1x128xf32> to vector<1xf32>
    %40 = vector.shape_cast %39 : vector<1xf32> to vector<1x1xf32>
    %c0_22 = arith.constant 0 : index
    %c0_23 = arith.constant 0 : index
    %41 = vector.load %arg14[%c0_22, %c0_23] : memref<1x1xf32, #tpu.memory_space<vmem>>, vector<1x1xf32>
    %42 = arith.maximumf %41, %40 : vector<1x1xf32>
    %c0_24 = arith.constant 0 : index
    %c0_25 = arith.constant 0 : index
    %43 = vector.load %arg14[%c0_24, %c0_25] : memref<1x1xf32, #tpu.memory_space<vmem>>, vector<1x1xf32>
    %44 = arith.subf %43, %42 : vector<1x1xf32>
    %45 = math.exp %44 : vector<1x1xf32>
    %46 = vector.broadcast %42 : vector<1x1xf32> to vector<1x128xf32>
    %47 = arith.subf %38, %46 : vector<1x128xf32>
    %48 = math.exp %47 : vector<1x128xf32>
    %c0_26 = arith.constant 0 : index
    %c0_27 = arith.constant 0 : index
    %49 = vector.load %arg15[%c0_26, %c0_27] : memref<1x1xf32, #tpu.memory_space<vmem>>, vector<1x1xf32>
    %50 = arith.mulf %45, %49 : vector<1x1xf32>
    %cst_28 = arith.constant dense<0.000000e+00> : vector<1xf32>
    %51 = vector.multi_reduction <add>, %48, %cst_28 [1] : vector<1x128xf32> to vector<1xf32>
    %52 = vector.shape_cast %51 : vector<1xf32> to vector<1x1xf32>
    %53 = arith.addf %50, %52 : vector<1x1xf32>
    %c0_29 = arith.constant 0 : index
    %c0_30 = arith.constant 0 : index
    %54 = vector.load %arg15[%c0_29, %c0_30] : memref<1x1xf32, #tpu.memory_space<vmem>>, vector<1x1xf32>
    tpu.vector_store %arg15[%c0_29, %c0_30], %53 {strides = array<i32>} : memref<1x1xf32, #tpu.memory_space<vmem>>, vector<1x1xf32>,
    %c0_31 = arith.constant 0 : index
    %c0_32 = arith.constant 0 : index
    %55 = vector.load %arg16[%c0_31, %c0_32] : memref<1x512xf32, #tpu.memory_space<vmem>>, vector<1x512xf32>
    %56 = vector.broadcast %45 : vector<1x1xf32> to vector<1x512xf32>
    %57 = arith.mulf %56, %55 : vector<1x512xf32>
    %58 = arith.truncf %48 : vector<1x128xf32> to vector<1x128xbf16>
    %cst_33 = arith.constant dense<0.000000e+00> : vector<1x512xf32>
    %59 = tpu.matmul %58, %12, %cst_33 {dimension_numbers = #tpu.dot_dimension_numbers<[1], [0], [0], [1], [0, 0, 1, 1], [], []>} : vector<1x128xbf16>, vector<128x512xbf16>, vector<1x512xf32> -> vector<1x512xf32>
    %60 = arith.addf %57, %59 : vector<1x512xf32>
    %c0_34 = arith.constant 0 : index
    %c0_35 = arith.constant 0 : index
    %61 = vector.load %arg16[%c0_34, %c0_35] : memref<1x512xf32, #tpu.memory_space<vmem>>, vector<1x512xf32>
    tpu.vector_store %arg16[%c0_34, %c0_35], %60 {strides = array<i32>} : memref<1x512xf32, #tpu.memory_space<vmem>>, vector<1x512xf32>,
    %c0_36 = arith.constant 0 : index
    %c0_37 = arith.constant 0 : index
    %62 = vector.load %arg14[%c0_36, %c0_37] : memref<1x1xf32, #tpu.memory_space<vmem>>, vector<1x1xf32>
    tpu.vector_store %arg14[%c0_36, %c0_37], %42 {strides = array<i32>} : memref<1x1xf32, #tpu.memory_space<vmem>>, vector<1x1xf32>,
    %c1_i32 = arith.constant 1 : i32
    %63 = arith.cmpi eq, %arg1, %c1_i32 : i32
    %64 = arith.extui %63 : i1 to i32
    %c0_i32_38 = arith.constant 0 : i32
    %65 = arith.cmpi ne, %64, %c0_i32_38 : i32
    scf.if %65 {
      %c0_39 = arith.constant 0 : index
      %c0_40 = arith.constant 0 : index
      %66 = vector.load %arg14[%c0_39, %c0_40] : memref<1x1xf32, #tpu.memory_space<vmem>>, vector<1x1xf32>
      %67 = vector.shape_cast %66 : vector<1x1xf32> to vector<1x1x1xf32>
      %68 = vector.shape_cast %67 : vector<1x1x1xf32> to vector<1x1x1xf32>
      %69 = vector.broadcast %68 : vector<1x1x1xf32> to vector<1x1x128xf32>
      %c0_41 = arith.constant 0 : index
      %c0_42 = arith.constant 0 : index
      %c0_43 = arith.constant 0 : index
      %70 = vector.load %arg11[%c0_41, %c0_42, %c0_43] : memref<1x1x128xf32, #tpu.memory_space<vmem>>, vector<1x1x128xf32>
      tpu.vector_store %arg11[%c0_41, %c0_42, %c0_43], %69 {strides = array<i32>} : memref<1x1x128xf32, #tpu.memory_space<vmem>>, vector<1x1x128xf32>,
      %c0_44 = arith.constant 0 : index
      %c0_45 = arith.constant 0 : index
      %71 = vector.load %arg15[%c0_44, %c0_45] : memref<1x1xf32, #tpu.memory_space<vmem>>, vector<1x1xf32>
      %72 = vector.shape_cast %71 : vector<1x1xf32> to vector<1x1x1xf32>
      %73 = vector.shape_cast %72 : vector<1x1x1xf32> to vector<1x1x1xf32>
      %74 = vector.broadcast %73 : vector<1x1x1xf32> to vector<1x1x128xf32>
      %c0_46 = arith.constant 0 : index
      %c0_47 = arith.constant 0 : index
      %c0_48 = arith.constant 0 : index
      %75 = vector.load %arg12[%c0_46, %c0_47, %c0_48] : memref<1x1x128xf32, #tpu.memory_space<vmem>>, vector<1x1x128xf32>
      tpu.vector_store %arg12[%c0_46, %c0_47, %c0_48], %74 {strides = array<i32>} : memref<1x1x128xf32, #tpu.memory_space<vmem>>, vector<1x1x128xf32>,
      %c0_49 = arith.constant 0 : index
      %c0_50 = arith.constant 0 : index
      %76 = vector.load %arg16[%c0_49, %c0_50] : memref<1x512xf32, #tpu.memory_space<vmem>>, vector<1x512xf32>
      %77 = vector.shape_cast %76 : vector<1x512xf32> to vector<1x1x512xf32>
      %c0_51 = arith.constant 0 : index
      %c0_52 = arith.constant 0 : index
      %c0_53 = arith.constant 0 : index
      %78 = vector.load %arg13[%c0_51, %c0_52, %c0_53] : memref<1x1x512xf32, #tpu.memory_space<vmem>>, vector<1x1x512xf32>
      tpu.vector_store %arg13[%c0_51, %c0_52, %c0_53], %77 {strides = array<i32>} : memref<1x1x512xf32, #tpu.memory_space<vmem>>, vector<1x1x512xf32>,
    } else {
    }
    return
  }
  func.func @transform_0(%arg0: i32, %arg1: i32, %arg2: memref<1xi32, #tpu.memory_space<smem>>) -> (i32, i32) {
    %c2_i32 = arith.constant 2 : i32
    %0 = arith.muli %arg0, %c2_i32 : i32
    %1 = arith.addi %0, %arg1 : i32
    %c0_i32 = arith.constant 0 : i32
    %c0_i32_0 = arith.constant 0 : i32
    return %1, %c0_i32 : i32, i32
  }
  func.func @transform_1(%arg0: i32, %arg1: i32, %arg2: memref<1xi32, #tpu.memory_space<smem>>) -> (i32, i32) {
    %c0_i32 = arith.constant 0 : i32
    %c0_i32_0 = arith.constant 0 : i32
    %c0_i32_1 = arith.constant 0 : i32
    return %c0_i32, %c0_i32_0 : i32, i32
  }
  func.func @transform_2(%arg0: i32, %arg1: i32, %arg2: memref<1xi32, #tpu.memory_space<smem>>) -> (i32, i32) {
    %c0_i32 = arith.constant 0 : i32
    %c0_i32_0 = arith.constant 0 : i32
    %c0_i32_1 = arith.constant 0 : i32
    return %c0_i32, %c0_i32_0 : i32, i32
  }
  func.func @transform_3(%arg0: i32, %arg1: i32, %arg2: memref<1xi32, #tpu.memory_space<smem>>) -> (i32, i32) {
    %c0_i32 = arith.constant 0 : i32
    %c0_i32_0 = arith.constant 0 : i32
    %c0_i32_1 = arith.constant 0 : i32
    return %c0_i32, %c0_i32_0 : i32, i32
  }
  func.func @transform_4(%arg0: i32, %arg1: i32, %arg2: memref<1xi32, #tpu.memory_space<smem>>) -> (i32, i32) {
    %c0_i32 = arith.constant 0 : i32
    %c0_i32_0 = arith.constant 0 : i32
    %c0_i32_1 = arith.constant 0 : i32
    return %c0_i32, %c0_i32_0 : i32, i32
  }
  func.func @transform_5(%arg0: i32, %arg1: i32, %arg2: memref<1xi32, #tpu.memory_space<smem>>) -> (i32, i32) {
    %c0_i32 = arith.constant 0 : i32
    %c0_i32_0 = arith.constant 0 : i32
    %c0_i32_1 = arith.constant 0 : i32
    return %c0_i32, %c0_i32_0 : i32, i32
  }
  func.func @transform_6(%arg0: i32, %arg1: i32, %arg2: memref<1xi32, #tpu.memory_space<smem>>) -> (i32, i32) {
    %c0_i32 = arith.constant 0 : i32
    %c0_i32_0 = arith.constant 0 : i32
    %c0_i32_1 = arith.constant 0 : i32
    return %c0_i32, %c0_i32_0 : i32, i32
  }
  func.func @transform_7(%arg0: i32, %arg1: i32, %arg2: memref<1xi32, #tpu.memory_space<smem>>) -> (i32, i32) {
    %c2_i32 = arith.constant 2 : i32
    %0 = arith.muli %arg0, %c2_i32 : i32
    %1 = arith.addi %0, %arg1 : i32
    %c0_i32 = arith.constant 0 : i32
    %c0_i32_0 = arith.constant 0 : i32
    return %c0_i32, %1 : i32, i32
  }
  func.func @transform_8(%arg0: i32, %arg1: i32, %arg2: memref<1xi32, #tpu.memory_space<smem>>) -> (i32, i32, i32) {
    %c0_i32 = arith.constant 0 : i32
    %c0_i32_0 = arith.constant 0 : i32
    %c0_i32_1 = arith.constant 0 : i32
    return %arg0, %c0_i32, %c0_i32_0 : i32, i32, i32
  }
  func.func @transform_9(%arg0: i32, %arg1: i32, %arg2: memref<1xi32, #tpu.memory_space<smem>>) -> (i32, i32, i32) {
    %c0_i32 = arith.constant 0 : i32
    %c0_i32_0 = arith.constant 0 : i32
    %c0_i32_1 = arith.constant 0 : i32
    return %arg0, %c0_i32, %c0_i32_0 : i32, i32, i32
  }
  func.func @transform_10(%arg0: i32, %arg1: i32, %arg2: memref<1xi32, #tpu.memory_space<smem>>) -> (i32, i32, i32) {
    %c0_i32 = arith.constant 0 : i32
    %c0_i32_0 = arith.constant 0 : i32
    %c0_i32_1 = arith.constant 0 : i32
    return %arg0, %c0_i32, %c0_i32_0 : i32, i32, i32
  }
}

</mosaic_0001>

<llo_original>
// kernel: dattention_forward.1
$region0: #{dattention_forward.1}
  #allocation0 [shape = 'u32[]', space=smem, size = 0x4, offset = 0x4, fixed_abs, tag = 'smem constant byte address 0x4 - core index']
  #allocation1 [shape = 'u32[72,128]{1,0:T(1,128)}', space=vmem, size = 0x9000, scoped, tag = 'internal scratch']
  #allocation2 [shape = 'f32[1,1]{1,0:T(1,128)}', space=vmem, size = 0x200, scoped, tag = 'scratch operand']
  #allocation3 [shape = 'f32[1,1]{1,0:T(1,128)}', space=vmem, size = 0x200, scoped, tag = 'scratch operand']
  #allocation4 [shape = 'f32[1,512]{1,0:T(1,128)}', space=vmem, size = 0x800, scoped, tag = 'scratch operand']
  #allocation5 [shape = 's32[1]{0}', space=sflag, size = 0x4, scoped, tag = 'scoped memory for dattention_forward.1']
  #allocation6 [shape = 's32[1]{0:T(128)S(6)}', space=smem, size = 0x200, scoped, tag = 'prefetched SMEM operand 0']
  #allocation7 [shape = 'f32[1,1]{1,0:T(1,128)S(1)}', space=vmem, size = 0x200, scoped, tag = 'scoped memory for dattention_forward.1']
  %s0 = inlined_call_operand.<no memory space> [shape: s32[1], index: 0, kind: input, shape index: {}]
  %s1 = inlined_call_operand.vmem [shape: bf16[512,64], index: 1, kind: input, shape index: {}]
  %s2 = inlined_call_operand.vmem [shape: bf16[64,512], index: 2, kind: input, shape index: {}]
  %s3 = inlined_call_operand.vmem [shape: f32[1,512], index: 3, kind: input, shape index: {}]
  %s4 = inlined_call_operand.vmem [shape: bf16[512,128], index: 4, kind: input, shape index: {}]
  %s5 = inlined_call_operand.vmem [shape: f32[1,128], index: 5, kind: input, shape index: {}]
  %s6 = inlined_call_operand.vmem [shape: f32[1,128], index: 6, kind: input, shape index: {}]
  %s7 = inlined_call_operand.<no memory space> [shape: f32[1,1], index: 7, kind: input, shape index: {}]
  %s8 = inlined_call_operand.vmem [shape: f32[1,512], index: 8, kind: output, shape index: {0}]
  %s9 = inlined_call_operand.vmem [shape: f32[2,1,128], index: 9, kind: output, shape index: {1}]
  %s10 = inlined_call_operand.vmem [shape: f32[2,1,128], index: 10, kind: output, shape index: {2}]
  %s11 = inlined_call_operand.vmem [shape: f32[2,1,512], index: 11, kind: output, shape index: {3}]
  %12 = xla_tuple %s8, %s9, %s10, %s11
  %s13 = sld [smem:[#allocation0]]
  $region93: #{dattention_forward.1} parent=0
    _
  %s15 = ssub.s32 1, %s13
  %s16 = scalar_select 0, %s15, %s13
  %17 = sst [smem:[#allocation6]] %s0
  %v18 = vstv %s7
  %19 = vst [vmem:[#allocation7] sm:$0x1] %v18
  loop: start=0, step=1, limit=6
  $region2: #{dattention_forward.1} parent=0 // loop_pre_header
    _
  $region3: #{dattention_forward.1} parent=0 // loop_header
    %s21 = sphi 0, %s25
    %p22 = scmp.ge.s32.totalorder %s21, 6
    %s28 = sphi 0, %s40
    %s29 = sphi 0, %s36
    %s30 = sphi 0, %s28
    %s31 = sphi 0, %s29
    %s32 = sphi 0, %s30
    %s33 = sphi 0, %s31
    %s47 = sphi 0, %s49
    %s50 = sphi 0, %s47
    %s51 = sphi 0, %s50
    %s67 = sphi 0, %s51
    %s71 = sphi 0, %s71
    %s73 = sphi 0, %s71
    %s74 = sphi 0, %s73
    %s88 = sphi 0, %s74
    %s92 = sphi 0, %s92
    %s94 = sphi 0, %s92
    %s95 = sphi 0, %s94
    %s109 = sphi 0, %s95
    %s113 = sphi 0, %s113
    %s115 = sphi 0, %s113
    %s116 = sphi 0, %s115
    %s130 = sphi 0, %s116
    %s134 = sphi 0, %s134
    %s136 = sphi 0, %s134
    %s137 = sphi 0, %s136
    %s151 = sphi 0, %s137
    %s155 = sphi 0, %s155
    %s157 = sphi 0, %s155
    %s158 = sphi 0, %s157
    %s172 = sphi 0, %s158
    %s176 = sphi 0, %s176
    %s178 = sphi 0, %s176
    %s179 = sphi 0, %s178
    %s193 = sphi 0, %s179
    %s203 = sphi 0, %s205
    %s206 = sphi 0, %s203
    %s207 = sphi 0, %s206
    %s223 = sphi 0, %s207
    %s229 = sphi 0, %s231
    %s232 = sphi 0, %s229
    %s233 = sphi 0, %s232
    %s249 = sphi 0, %s233
    %s255 = sphi 0, %s257
    %s258 = sphi 0, %s255
    %s259 = sphi 0, %s258
    %s275 = sphi 0, %s259
    %s281 = sphi 0, %s283
    %s284 = sphi 0, %s281
    %s285 = sphi 0, %s284
    %s301 = sphi 0, %s285
  $region4: #{dattention_forward.1} parent=0 // loop_header_branch
    %24 = sbr.rel (%p22) target = $region8
  $region5: #{dattention_forward.1} parent=0 // loop_body
    %s26 = ssub.s32 %s21, 1
    %s27 = ssub.s32 %s21, 2
    %s34 = sadd.s32 1, %s29
    %p35 = scmp.ge.s32.totalorder %s34, 2
    %s36 = scalar_select %p35, 0, %s34
    %s37 = sadd.s32 1, %s28
    %s38 = scalar_select %p35, %s37, %s28
    %p39 = scmp.ge.s32.totalorder %s38, 2
    %s40 = scalar_select %p39, 0, %s38
    %s41 = smul.u32 %s28, 2
    %s42 = sadd.s32 %s41, %s29
    %s43 = smul.u32 %s40, 2
    %s44 = sadd.s32 %s43, %s36
    %s45 = ssub.s32 %s42, %s44
    %p46 = scmp.eq.s32.totalorder %s45, 0
    %s48 = sadd.s32 %s47, 1
    %s49 = scalar_select %p46, %s47, %s48
    %p52 = pneg %p46
    %p53 = scmp.eq.s32.totalorder %s21, 3
    %p54 = por %p52, %p53
    %p55 = scmp.ne.s32.totalorder %s47, %s50
    %p56 = scmp.eq.s32.totalorder %s21, 0
    %p57 = por %p55, %p56
    %p58 = scmp.ne.s32.totalorder %s47, %s50
    %p59 = scmp.eq.s32.totalorder %s26, 3
    %p60 = por %p58, %p59
    %p61 = scmp.ne.s32.totalorder %s50, %s51
    %p62 = scmp.eq.s32.totalorder %s26, 0
    %p63 = por %p61, %p62
    %p64 = scmp.ne.s32.totalorder %s50, %s51
    %p65 = scmp.eq.s32.totalorder %s27, 3
    %p66 = por %p64, %p65
    %p68 = scmp.ne.s32.totalorder %s51, %s67
    %p69 = scmp.eq.s32.totalorder %s27, 0
    %p70 = por %p68, %p69
    %s72 = sadd.s32 %s71, 1
    %p75 = scmp.eq.s32.totalorder %s21, 3
    %p76 = scmp.ne.s32.totalorder %s71, %s73
    %p77 = scmp.eq.s32.totalorder %s21, 0
    %p78 = por %p76, %p77
    %p79 = scmp.ne.s32.totalorder %s71, %s73
    %p80 = scmp.eq.s32.totalorder %s26, 3
    %p81 = por %p79, %p80
    %p82 = scmp.ne.s32.totalorder %s73, %s74
    %p83 = scmp.eq.s32.totalorder %s26, 0
    %p84 = por %p82, %p83
    %p85 = scmp.ne.s32.totalorder %s73, %s74
    %p86 = scmp.eq.s32.totalorder %s27, 3
    %p87 = por %p85, %p86
    %p89 = scmp.ne.s32.totalorder %s74, %s88
    %p90 = scmp.eq.s32.totalorder %s27, 0
    %p91 = por %p89, %p90
    %s93 = sadd.s32 %s92, 1
    %p96 = scmp.eq.s32.totalorder %s21, 3
    %p97 = scmp.ne.s32.totalorder %s92, %s94
    %p98 = scmp.eq.s32.totalorder %s21, 0
    %p99 = por %p97, %p98
    %p100 = scmp.ne.s32.totalorder %s92, %s94
    %p101 = scmp.eq.s32.totalorder %s26, 3
    %p102 = por %p100, %p101
    %p103 = scmp.ne.s32.totalorder %s94, %s95
    %p104 = scmp.eq.s32.totalorder %s26, 0
    %p105 = por %p103, %p104
    %p106 = scmp.ne.s32.totalorder %s94, %s95
    %p107 = scmp.eq.s32.totalorder %s27, 3
    %p108 = por %p106, %p107
    %p110 = scmp.ne.s32.totalorder %s95, %s109
    %p111 = scmp.eq.s32.totalorder %s27, 0
    %p112 = por %p110, %p111
    %s114 = sadd.s32 %s113, 1
    %p117 = scmp.eq.s32.totalorder %s21, 3
    %p118 = scmp.ne.s32.totalorder %s113, %s115
    %p119 = scmp.eq.s32.totalorder %s21, 0
    %p120 = por %p118, %p119
    %p121 = scmp.ne.s32.totalorder %s113, %s115
    %p122 = scmp.eq.s32.totalorder %s26, 3
    %p123 = por %p121, %p122
    %p124 = scmp.ne.s32.totalorder %s115, %s116
    %p125 = scmp.eq.s32.totalorder %s26, 0
    %p126 = por %p124, %p125
    %p127 = scmp.ne.s32.totalorder %s115, %s116
    %p128 = scmp.eq.s32.totalorder %s27, 3
    %p129 = por %p127, %p128
    %p131 = scmp.ne.s32.totalorder %s116, %s130
    %p132 = scmp.eq.s32.totalorder %s27, 0
    %p133 = por %p131, %p132
    %s135 = sadd.s32 %s134, 1
    %p138 = scmp.eq.s32.totalorder %s21, 3
    %p139 = scmp.ne.s32.totalorder %s134, %s136
    %p140 = scmp.eq.s32.totalorder %s21, 0
    %p141 = por %p139, %p140
    %p142 = scmp.ne.s32.totalorder %s134, %s136
    %p143 = scmp.eq.s32.totalorder %s26, 3
    %p144 = por %p142, %p143
    %p145 = scmp.ne.s32.totalorder %s136, %s137
    %p146 = scmp.eq.s32.totalorder %s26, 0
    %p147 = por %p145, %p146
    %p148 = scmp.ne.s32.totalorder %s136, %s137
    %p149 = scmp.eq.s32.totalorder %s27, 3
    %p150 = por %p148, %p149
    %p152 = scmp.ne.s32.totalorder %s137, %s151
    %p153 = scmp.eq.s32.totalorder %s27, 0
    %p154 = por %p152, %p153
    %s156 = sadd.s32 %s155, 1
    %p159 = scmp.eq.s32.totalorder %s21, 3
    %p160 = scmp.ne.s32.totalorder %s155, %s157
    %p161 = scmp.eq.s32.totalorder %s21, 0
    %p162 = por %p160, %p161
    %p163 = scmp.ne.s32.totalorder %s155, %s157
    %p164 = scmp.eq.s32.totalorder %s26, 3
    %p165 = por %p163, %p164
    %p166 = scmp.ne.s32.totalorder %s157, %s158
    %p167 = scmp.eq.s32.totalorder %s26, 0
    %p168 = por %p166, %p167
    %p169 = scmp.ne.s32.totalorder %s157, %s158
    %p170 = scmp.eq.s32.totalorder %s27, 3
    %p171 = por %p169, %p170
    %p173 = scmp.ne.s32.totalorder %s158, %s172
    %p174 = scmp.eq.s32.totalorder %s27, 0
    %p175 = por %p173, %p174
    %s177 = sadd.s32 %s176, 1
    %p180 = scmp.eq.s32.totalorder %s21, 3
    %p181 = scmp.ne.s32.totalorder %s176, %s178
    %p182 = scmp.eq.s32.totalorder %s21, 0
    %p183 = por %p181, %p182
    %p184 = scmp.ne.s32.totalorder %s176, %s178
    %p185 = scmp.eq.s32.totalorder %s26, 3
    %p186 = por %p184, %p185
    %p187 = scmp.ne.s32.totalorder %s178, %s179
    %p188 = scmp.eq.s32.totalorder %s26, 0
    %p189 = por %p187, %p188
    %p190 = scmp.ne.s32.totalorder %s178, %s179
    %p191 = scmp.eq.s32.totalorder %s27, 3
    %p192 = por %p190, %p191
    %p194 = scmp.ne.s32.totalorder %s179, %s193
    %p195 = scmp.eq.s32.totalorder %s27, 0
    %p196 = por %p194, %p195
    %s197 = smul.u32 %s28, 2
    %s198 = sadd.s32 %s197, %s29
    %s199 = smul.u32 %s40, 2
    %s200 = sadd.s32 %s199, %s36
    %s201 = ssub.s32 %s198, %s200
    %p202 = scmp.eq.s32.totalorder %s201, 0
    %s204 = sadd.s32 %s203, 1
    %s205 = scalar_select %p202, %s203, %s204
    %p208 = pneg %p202
    %p209 = scmp.eq.s32.totalorder %s21, 3
    %p210 = por %p208, %p209
    %p211 = scmp.ne.s32.totalorder %s203, %s206
    %p212 = scmp.eq.s32.totalorder %s21, 0
    %p213 = por %p211, %p212
    %p214 = scmp.ne.s32.totalorder %s203, %s206
    %p215 = scmp.eq.s32.totalorder %s26, 3
    %p216 = por %p214, %p215
    %p217 = scmp.ne.s32.totalorder %s206, %s207
    %p218 = scmp.eq.s32.totalorder %s26, 0
    %p219 = por %p217, %p218
    %p220 = scmp.ne.s32.totalorder %s206, %s207
    %p221 = scmp.eq.s32.totalorder %s27, 3
    %p222 = por %p220, %p221
    %p224 = scmp.ne.s32.totalorder %s207, %s223
    %p225 = scmp.eq.s32.totalorder %s27, 0
    %p226 = por %p224, %p225
    %s227 = ssub.s32 %s28, %s40
    %p228 = scmp.eq.s32.totalorder %s227, 0
    %s230 = sadd.s32 %s229, 1
    %s231 = scalar_select %p228, %s229, %s230
    %p234 = pneg %p228
    %p235 = scmp.eq.s32.totalorder %s21, 3
    %p236 = por %p234, %p235
    %p237 = scmp.ne.s32.totalorder %s229, %s232
    %p238 = scmp.eq.s32.totalorder %s21, 0
    %p239 = por %p237, %p238
    %p240 = scmp.ne.s32.totalorder %s229, %s232
    %p241 = scmp.eq.s32.totalorder %s26, 3
    %p242 = por %p240, %p241
    %p243 = scmp.ne.s32.totalorder %s232, %s233
    %p244 = scmp.eq.s32.totalorder %s26, 0
    %p245 = por %p243, %p244
    %p246 = scmp.ne.s32.totalorder %s232, %s233
    %p247 = scmp.eq.s32.totalorder %s27, 3
    %p248 = por %p246, %p247
    %p250 = scmp.ne.s32.totalorder %s233, %s249
    %p251 = scmp.eq.s32.totalorder %s27, 0
    %p252 = por %p250, %p251
    %s253 = ssub.s32 %s28, %s40
    %p254 = scmp.eq.s32.totalorder %s253, 0
    %s256 = sadd.s32 %s255, 1
    %s257 = scalar_select %p254, %s255, %s256
    %p260 = pneg %p254
    %p261 = scmp.eq.s32.totalorder %s21, 3
    %p262 = por %p260, %p261
    %p263 = scmp.ne.s32.totalorder %s255, %s258
    %p264 = scmp.eq.s32.totalorder %s21, 0
    %p265 = por %p263, %p264
    %p266 = scmp.ne.s32.totalorder %s255, %s258
    %p267 = scmp.eq.s32.totalorder %s26, 3
    %p268 = por %p266, %p267
    %p269 = scmp.ne.s32.totalorder %s258, %s259
    %p270 = scmp.eq.s32.totalorder %s26, 0
    %p271 = por %p269, %p270
    %p272 = scmp.ne.s32.totalorder %s258, %s259
    %p273 = scmp.eq.s32.totalorder %s27, 3
    %p274 = por %p272, %p273
    %p276 = scmp.ne.s32.totalorder %s259, %s275
    %p277 = scmp.eq.s32.totalorder %s27, 0
    %p278 = por %p276, %p277
    %s279 = ssub.s32 %s28, %s40
    %p280 = scmp.eq.s32.totalorder %s279, 0
    %s282 = sadd.s32 %s281, 1
    %s283 = scalar_select %p280, %s281, %s282
    %p286 = pneg %p280
    %p287 = scmp.eq.s32.totalorder %s21, 3
    %p288 = por %p286, %p287
    %p289 = scmp.ne.s32.totalorder %s281, %s284
    %p290 = scmp.eq.s32.totalorder %s21, 0
    %p291 = por %p289, %p290
    %p292 = scmp.ne.s32.totalorder %s281, %s284
    %p293 = scmp.eq.s32.totalorder %s26, 3
    %p294 = por %p292, %p293
    %p295 = scmp.ne.s32.totalorder %s284, %s285
    %p296 = scmp.eq.s32.totalorder %s26, 0
    %p297 = por %p295, %p296
    %p298 = scmp.ne.s32.totalorder %s284, %s285
    %p299 = scmp.eq.s32.totalorder %s27, 3
    %p300 = por %p298, %p299
    %p302 = scmp.ne.s32.totalorder %s285, %s301
    %p303 = scmp.eq.s32.totalorder %s27, 0
    %p304 = por %p302, %p303
    %p305 = scmp.le.s32.totalorder 1, %s21
    %p306 = scmp.lt.s32.totalorder %s21, 5
    %p307 = pnand %p305, %p306
    %p308 = pneg %p307
    // Predicated region
    $region9: #{dattention_forward.1} parent=5 // pred_check
      _
    $region10: #{dattention_forward.1} parent=5 // pred_check_branch
      %310 = sbr.rel (%p307) target = $region12
    $region11: #{dattention_forward.1} parent=5 // pred_region
      %s311 = ssub.s32 %s21, 1
      // Predicated region
      $region13: #{dattention_forward.1} parent=11 // pred_check
        %p312 = pneg %p84
      $region14: #{dattention_forward.1} parent=11 // pred_check_branch
        %314 = sbr.rel (%p312) target = $region16
      $region15: #{dattention_forward.1} parent=11 // pred_region
        _
      $region16: #{dattention_forward.1} parent=11 // pred_fallthru
        _
      // Predicated region
      $region17: #{dattention_forward.1} parent=11 // pred_check
        %p315 = pneg %p105
      $region18: #{dattention_forward.1} parent=11 // pred_check_branch
        %317 = sbr.rel (%p315) target = $region20
      $region19: #{dattention_forward.1} parent=11 // pred_region
        _
      $region20: #{dattention_forward.1} parent=11 // pred_fallthru
        _
      // Predicated region
      $region21: #{dattention_forward.1} parent=11 // pred_check
        %p318 = pneg %p126
      $region22: #{dattention_forward.1} parent=11 // pred_check_branch
        %320 = sbr.rel (%p318) target = $region24
      $region23: #{dattention_forward.1} parent=11 // pred_region
        _
      $region24: #{dattention_forward.1} parent=11 // pred_fallthru
        _
      // Predicated region
      $region25: #{dattention_forward.1} parent=11 // pred_check
        %p321 = pneg %p147
      $region26: #{dattention_forward.1} parent=11 // pred_check_branch
        %323 = sbr.rel (%p321) target = $region28
      $region27: #{dattention_forward.1} parent=11 // pred_region
        _
      $region28: #{dattention_forward.1} parent=11 // pred_fallthru
        _
      // Predicated region
      $region29: #{dattention_forward.1} parent=11 // pred_check
        %p324 = pneg %p168
      $region30: #{dattention_forward.1} parent=11 // pred_check_branch
        %326 = sbr.rel (%p324) target = $region32
      $region31: #{dattention_forward.1} parent=11 // pred_region
        _
      $region32: #{dattention_forward.1} parent=11 // pred_fallthru
        _
      // Predicated region
      $region33: #{dattention_forward.1} parent=11 // pred_check
        %p327 = pneg %p189
      $region34: #{dattention_forward.1} parent=11 // pred_check_branch
        %329 = sbr.rel (%p327) target = $region36
      $region35: #{dattention_forward.1} parent=11 // pred_region
        _
      $region36: #{dattention_forward.1} parent=11 // pred_fallthru
        _
    $region12: #{dattention_forward.1} parent=5 // pred_fallthru
      _
    %p330 = scmp.lt.s32.totalorder %s21, 4
    // Predicated region
    $region37: #{dattention_forward.1} parent=5 // pred_check
      %p331 = pneg %p330
    $region38: #{dattention_forward.1} parent=5 // pred_check_branch
      %333 = sbr.rel (%p331) target = $region40
    $region39: #{dattention_forward.1} parent=5 // pred_region
      // Predicated region
      $region41: #{dattention_forward.1} parent=39 // pred_check
        %p334 = pneg %p57
      $region42: #{dattention_forward.1} parent=39 // pred_check_branch
        %336 = sbr.rel (%p334) target = $region44
      $region43: #{dattention_forward.1} parent=39 // pred_region
        %s337 = smul.u32 %s28, 2
        %s338 = sadd.s32 %s337, %s29
        %s339 = smul.u32 16, %s338
        %p340 = scmp.lt.s32.totalorder %s339, 63
        %s341 = scalar_select %p340, %s339, 63
        %s342 = smul.addr %s341, 4
        %s343 = scalar_lea.vmem %s1, %s342
        %s344 = smul.u32 %s28, 2
        %s345 = sadd.s32 %s344, %s29
        %s346 = smul.u32 16, %s345
      $region44: #{dattention_forward.1} parent=39 // pred_fallthru
        _
    $region40: #{dattention_forward.1} parent=5 // pred_fallthru
      _
    %p347 = scmp.le.s32.totalorder 1, %s21
    %p348 = scmp.lt.s32.totalorder %s21, 5
    %p349 = pnand %p347, %p348
    %p350 = pneg %p349
    // Predicated region
    $region45: #{dattention_forward.1} parent=5 // pred_check
      _
    $region46: #{dattention_forward.1} parent=5 // pred_check_branch
      %352 = sbr.rel (%p349) target = $region48
    $region47: #{dattention_forward.1} parent=5 // pred_region
      %s353 = ssub.s32 %s21, 1
      %s354 = smul.u32 %s30, 2
      %s355 = sadd.s32 %s354, %s31
      %s356 = smul.u32 16, %s355
      %p357 = scmp.lt.s32.totalorder %s356, 63
      %s358 = scalar_select %p357, %s356, 63
      %s359 = smul.addr %s358, 4
      %s360 = scalar_lea.vmem %s1, %s359
      %p361 = pneg %p63
      %p362 = pneg %p60
      %p363 = pneg %p84
      %p364 = pneg %p81
      %p365 = pneg %p105
      %p366 = pneg %p102
      %p367 = pneg %p126
      %p368 = pneg %p123
      %p369 = pneg %p147
      %p370 = pneg %p144
      %p371 = pneg %p168
      %p372 = pneg %p165
      %p373 = pneg %p189
      %p374 = pneg %p186
      %p375 = pneg %p219
      %p376 = pneg %p216
      %s377 = smul.u32 %s30, 2
      %s378 = sadd.s32 %s377, %s31
      %p379 = scmp.lt.s32.totalorder %s378, 3
      %s380 = scalar_select %p379, %s378, 3
      %s381 = scalar_lea.vmem %s8, %s380
      %p382 = pneg %p245
      %p383 = pneg %p242
      %p384 = scmp.lt.s32.totalorder %s30, 1
      %s385 = scalar_select %p384, %s30, 1
      %s386 = scalar_lea.vmem %s9, %s385
      %p387 = pneg %p271
      %p388 = pneg %p268
      %p389 = scmp.lt.s32.totalorder %s30, 1
      %s390 = scalar_select %p389, %s30, 1
      %s391 = scalar_lea.vmem %s10, %s390
      %p392 = pneg %p297
      %p393 = pneg %p294
      %p394 = scmp.lt.s32.totalorder %s30, 1
      %s395 = scalar_select %p394, %s30, 1
      %s396 = smul.addr %s395, 4
      %s397 = scalar_lea.vmem %s11, %s396
      %s398 = smul.u32 %s30, 2
      %s399 = sadd.s32 %s398, %s31
      %s400 = smul.u32 16, %s399
      %p401 = scmp.lt.s32.totalorder %s400, 63
      %s402 = scalar_select %p401, %s400, 63
      %s403 = smul.addr %s402, 4
      %s404 = scalar_lea.vmem %s1, %s403
      %s405 = smul.u32 %s30, 2
      %s406 = sadd.s32 %s405, %s31
      %s407 = smul.u32 16, %s406
      %s408 = smul.u32 %s30, 2
      %s409 = sadd.s32 %s408, %s31
      %p410 = scmp.lt.s32.totalorder %s409, 3
      %s411 = scalar_select %p410, %s409, 3
      %s412 = scalar_lea.vmem %s8, %s411
      %s413 = smul.u32 %s30, 2
      %s414 = sadd.s32 %s413, %s31
      %p415 = scmp.lt.s32.totalorder %s30, 1
      %s416 = scalar_select %p415, %s30, 1
      %s417 = scalar_lea.vmem %s9, %s416
      %p418 = scmp.lt.s32.totalorder %s30, 1
      %s419 = scalar_select %p418, %s30, 1
      %s420 = scalar_lea.vmem %s10, %s419
      %p421 = scmp.lt.s32.totalorder %s30, 1
      %s422 = scalar_select %p421, %s30, 1
      %s423 = smul.addr %s422, 4
      %s424 = scalar_lea.vmem %s11, %s423
      %s426 = sld [smem:[#allocation6]]
      %p427 = scmp.eq.s32.totalorder %s31, 0
      // Predicated region
      $region49: #{dattention_forward.1} parent=47 // pred_check
        %p428 = pneg %p427
      $region50: #{dattention_forward.1} parent=47 // pred_check_branch
        %430 = sbr.rel (%p428) target = $region52
      $region51: #{dattention_forward.1} parent=47 // pred_region
        %vm431 = vcmask 0
        %432 = vst.msk [vmem:[#allocation2] sm:$0x1] %vm431, -inf
        %433 = vst.msk [vmem:[#allocation3] sm:$0x1] %vm431, 0.0
        %v434 = vlaneseq
        %vm435 = vcmp.ge.s32.totalorder %v434, 0
        %vm436 = vcmp.lt.s32.totalorder %v434, 512
        %vm437 = vmand %vm435, %vm436
        %438 = vst.msk [vmem:[#allocation4] sm:$0xf] %vm437, 0.0
      $region52: #{dattention_forward.1} parent=47 // pred_fallthru
        _
      %v439 = vld [vmem:[%s404] sm:$0xf]
      %v440 = vld [vmem:[%s404 + $0x4] sm:$0xf]
      %v441 = vld [vmem:[%s404 + $0x8] sm:$0xf]
      %v442 = vld [vmem:[%s404 + $0xc] sm:$0xf]
      %v443 = vld [vmem:[%s404 + $0x10] sm:$0xf]
      %v444 = vld [vmem:[%s404 + $0x14] sm:$0xf]
      %v445 = vld [vmem:[%s404 + $0x18] sm:$0xf]
      %v446 = vld [vmem:[%s404 + $0x1c] sm:$0xf]
      %v447 = vld [vmem:[%s404 + $0x20] sm:$0xf]
      %v448 = vld [vmem:[%s404 + $0x24] sm:$0xf]
      %v449 = vld [vmem:[%s404 + $0x28] sm:$0xf]
      %v450 = vld [vmem:[%s404 + $0x2c] sm:$0xf]
      %v451 = vld [vmem:[%s404 + $0x30] sm:$0xf]
      %v452 = vld [vmem:[%s404 + $0x34] sm:$0xf]
      %v453 = vld [vmem:[%s404 + $0x38] sm:$0xf]
      %v454 = vld [vmem:[%s404 + $0x3c] sm:$0xf]
      %v455 = vld [vmem:[%s2] sm:$0xff]
      %v456 = vld [vmem:[%s2 + $0x8] sm:$0xff]
      %v457 = vld [vmem:[%s2 + $0x10] sm:$0xff]
      %v458 = vld [vmem:[%s2 + $0x18] sm:$0xff]
      %v459 = vld [vmem:[%s2 + $0x20] sm:$0xff]
      %v460 = vld [vmem:[%s2 + $0x28] sm:$0xff]
      %v461 = vld [vmem:[%s2 + $0x30] sm:$0xff]
      %v462 = vld [vmem:[%s2 + $0x38] sm:$0xff]
      %v463 = vld [vmem:[%s2 + $0x40] sm:$0xff]
      %v464 = vld [vmem:[%s2 + $0x48] sm:$0xff]
      %v465 = vld [vmem:[%s2 + $0x50] sm:$0xff]
      %v466 = vld [vmem:[%s2 + $0x58] sm:$0xff]
      %v467 = vld [vmem:[%s2 + $0x60] sm:$0xff]
      %v468 = vld [vmem:[%s2 + $0x68] sm:$0xff]
      %v469 = vld [vmem:[%s2 + $0x70] sm:$0xff]
      %v470 = vld [vmem:[%s2 + $0x78] sm:$0xff]
      %v471 = vld [vmem:[%s3] sm:$0xf]
      %v473 = vperm.slane %v471, 0
      %v474 = vperm.slane %v471, 1
      %v475 = vperm.slane %v471, 2
      %v476 = vperm.slane %v471, 3
      %v497 = vunpack.c.l.b16 %v439
      %v498 = vunpack.c.l.b16 %v440
      %v499 = vunpack.c.l.b16 %v441
      %v500 = vunpack.c.l.b16 %v442
      %v501 = vunpack.c.l.b16 %v443
      %v502 = vunpack.c.l.b16 %v444
      %v503 = vunpack.c.l.b16 %v445
      %v504 = vunpack.c.l.b16 %v446
      %v505 = vunpack.c.l.b16 %v447
      %v506 = vunpack.c.l.b16 %v448
      %v507 = vunpack.c.l.b16 %v449
      %v508 = vunpack.c.l.b16 %v450
      %v509 = vunpack.c.l.b16 %v451
      %v510 = vunpack.c.l.b16 %v452
      %v511 = vunpack.c.l.b16 %v453
      %v512 = vunpack.c.l.b16 %v454
      %v513 = vpack.c.b16 %v498, %v497
      %v514 = vpack.c.b16 %v500, %v499
      %v515 = vpack.c.b16 %v502, %v501
      %v516 = vpack.c.b16 %v504, %v503
      %v517 = vpack.c.b16 %v506, %v505
      %v518 = vpack.c.b16 %v508, %v507
      %v519 = vpack.c.b16 %v510, %v509
      %v520 = vpack.c.b16 %v512, %v511
      %v537 = vunpack.c.l.b16 %v455
      %v538 = vunpack.c.h.b16 %v455
      %v539 = vunpack.c.l.b16 %v456
      %v540 = vunpack.c.h.b16 %v456
      %v541 = vunpack.c.l.b16 %v457
      %v542 = vunpack.c.h.b16 %v457
      %v543 = vunpack.c.l.b16 %v458
      %v544 = vunpack.c.h.b16 %v458
      %v545 = vunpack.c.l.b16 %v459
      %v546 = vunpack.c.h.b16 %v459
      %v547 = vunpack.c.l.b16 %v460
      %v548 = vunpack.c.h.b16 %v460
      %v549 = vunpack.c.l.b16 %v461
      %v550 = vunpack.c.h.b16 %v461
      %v551 = vunpack.c.l.b16 %v462
      %v552 = vunpack.c.h.b16 %v462
      %v553 = vunpack.c.l.b16 %v463
      %v554 = vunpack.c.h.b16 %v463
      %v555 = vunpack.c.l.b16 %v464
      %v556 = vunpack.c.h.b16 %v464
      %v557 = vunpack.c.l.b16 %v465
      %v558 = vunpack.c.h.b16 %v465
      %v559 = vunpack.c.l.b16 %v466
      %v560 = vunpack.c.h.b16 %v466
      %v561 = vunpack.c.l.b16 %v467
      %v562 = vunpack.c.h.b16 %v467
      %v563 = vunpack.c.l.b16 %v468
      %v564 = vunpack.c.h.b16 %v468
      %v565 = vunpack.c.l.b16 %v469
      %v566 = vunpack.c.h.b16 %v469
      %v567 = vunpack.c.l.b16 %v470
      %v568 = vunpack.c.h.b16 %v470
      %v569 = vpack.c.b16 %v541, %v537
      %v570 = vpack.c.b16 %v542, %v538
      %v571 = vpack.c.b16 %v543, %v539
      %v572 = vpack.c.b16 %v544, %v540
      %v573 = vpack.c.b16 %v549, %v545
      %v574 = vpack.c.b16 %v550, %v546
      %v575 = vpack.c.b16 %v551, %v547
      %v576 = vpack.c.b16 %v552, %v548
      %v577 = vpack.c.b16 %v557, %v553
      %v578 = vpack.c.b16 %v558, %v554
      %v579 = vpack.c.b16 %v559, %v555
      %v580 = vpack.c.b16 %v560, %v556
      %v581 = vpack.c.b16 %v565, %v561
      %v582 = vpack.c.b16 %v566, %v562
      %v583 = vpack.c.b16 %v567, %v563
      %v584 = vpack.c.b16 %v568, %v564
      %vm601 = vcmask 523264
      %v603 = vsel %vm601, %v513, 0
      %v606 = vsel %vm601, %v514, 0
      %v609 = vsel %vm601, %v515, 0
      %v612 = vsel %vm601, %v516, 0
      %v615 = vsel %vm601, %v517, 0
      %v618 = vsel %vm601, %v518, 0
      %v621 = vsel %vm601, %v519, 0
      %v624 = vsel %vm601, %v520, 0
      %626 = vmatpush.bf16.msra.mxu0 0
      %627 = vmatpush.bf16.msra.mxu0 0
      %628 = vmatpush.bf16.msra.mxu0 0
      %629 = vmatpush.bf16.msra.mxu0 0
      %630 = vmatpush.bf16.msra.mxu0 %v581
      %631 = vmatpush.bf16.msra.mxu0 %v577
      %632 = vmatpush.bf16.msra.mxu0 %v573
      %633 = vmatpush.bf16.msra.mxu0 %v569
      %634 = vmatmul.bf16.gmra.mxu0 %v603
      %v635 = vpop.f32.mrf.mxu0
      %v636 = vadd.f32 %v473, %v635
      %v637 = vpop.f32.mrf.mxu0
      %v638 = vadd.f32 %v473, %v637
      %639 = vmatmul.bf16.gmra.mxu0 %v606
      %v640 = vpop.f32.mrf.mxu0
      %v641 = vadd.f32 %v473, %v640
      %v642 = vpop.f32.mrf.mxu0
      %v643 = vadd.f32 %v473, %v642
      %644 = vmatmul.bf16.gmra.mxu0 %v609
      %v645 = vpop.f32.mrf.mxu0
      %v646 = vadd.f32 %v473, %v645
      %v647 = vpop.f32.mrf.mxu0
      %v648 = vadd.f32 %v473, %v647
      %649 = vmatmul.bf16.gmra.mxu0 %v612
      %v650 = vpop.f32.mrf.mxu0
      %v651 = vadd.f32 %v473, %v650
      %v652 = vpop.f32.mrf.mxu0
      %v653 = vadd.f32 %v473, %v652
      %654 = vmatmul.bf16.gmra.mxu0 %v615
      %v655 = vpop.f32.mrf.mxu0
      %v656 = vadd.f32 %v473, %v655
      %v657 = vpop.f32.mrf.mxu0
      %v658 = vadd.f32 %v473, %v657
      %659 = vmatmul.bf16.gmra.mxu0 %v618
      %v660 = vpop.f32.mrf.mxu0
      %v661 = vadd.f32 %v473, %v660
      %v662 = vpop.f32.mrf.mxu0
      %v663 = vadd.f32 %v473, %v662
      %664 = vmatmul.bf16.gmra.mxu0 %v621
      %v665 = vpop.f32.mrf.mxu0
      %v666 = vadd.f32 %v473, %v665
      %v667 = vpop.f32.mrf.mxu0
      %v668 = vadd.f32 %v473, %v667
      %669 = vmatmul.bf16.gmra.mxu0 %v624
      %v670 = vpop.f32.mrf.mxu0
      %v671 = vadd.f32 %v473, %v670
      %v672 = vpop.f32.mrf.mxu0
      %v673 = vadd.f32 %v473, %v672
      %674 = vdwg.mxu0
      %675 = vmatpush.bf16.msra.mxu0 0
      %676 = vmatpush.bf16.msra.mxu0 0
      %677 = vmatpush.bf16.msra.mxu0 0
      %678 = vmatpush.bf16.msra.mxu0 0
      %679 = vmatpush.bf16.msra.mxu0 %v582
      %680 = vmatpush.bf16.msra.mxu0 %v578
      %681 = vmatpush.bf16.msra.mxu0 %v574
      %682 = vmatpush.bf16.msra.mxu0 %v570
      %683 = vmatmul.bf16.gmra.mxu0 %v603
      %v684 = vpop.f32.mrf.mxu0
      %v685 = vadd.f32 %v474, %v684
      %v686 = vpop.f32.mrf.mxu0
      %v687 = vadd.f32 %v474, %v686
      %688 = vmatmul.bf16.gmra.mxu0 %v606
      %v689 = vpop.f32.mrf.mxu0
      %v690 = vadd.f32 %v474, %v689
      %v691 = vpop.f32.mrf.mxu0
      %v692 = vadd.f32 %v474, %v691
      %693 = vmatmul.bf16.gmra.mxu0 %v609
      %v694 = vpop.f32.mrf.mxu0
      %v695 = vadd.f32 %v474, %v694
      %v696 = vpop.f32.mrf.mxu0
      %v697 = vadd.f32 %v474, %v696
      %698 = vmatmul.bf16.gmra.mxu0 %v612
      %v699 = vpop.f32.mrf.mxu0
      %v700 = vadd.f32 %v474, %v699
      %v701 = vpop.f32.mrf.mxu0
      %v702 = vadd.f32 %v474, %v701
      %703 = vmatmul.bf16.gmra.mxu0 %v615
      %v704 = vpop.f32.mrf.mxu0
      %v705 = vadd.f32 %v474, %v704
      %v706 = vpop.f32.mrf.mxu0
      %v707 = vadd.f32 %v474, %v706
      %708 = vmatmul.bf16.gmra.mxu0 %v618
      %v709 = vpop.f32.mrf.mxu0
      %v710 = vadd.f32 %v474, %v709
      %v711 = vpop.f32.mrf.mxu0
      %v712 = vadd.f32 %v474, %v711
      %713 = vmatmul.bf16.gmra.mxu0 %v621
      %v714 = vpop.f32.mrf.mxu0
      %v715 = vadd.f32 %v474, %v714
      %v716 = vpop.f32.mrf.mxu0
      %v717 = vadd.f32 %v474, %v716
      %718 = vmatmul.bf16.gmra.mxu0 %v624
      %v719 = vpop.f32.mrf.mxu0
      %v720 = vadd.f32 %v474, %v719
      %v721 = vpop.f32.mrf.mxu0
      %v722 = vadd.f32 %v474, %v721
      %723 = vdwg.mxu0
      %724 = vmatpush.bf16.msra.mxu0 0
      %725 = vmatpush.bf16.msra.mxu0 0
      %726 = vmatpush.bf16.msra.mxu0 0
      %727 = vmatpush.bf16.msra.mxu0 0
      %728 = vmatpush.bf16.msra.mxu0 %v583
      %729 = vmatpush.bf16.msra.mxu0 %v579
      %730 = vmatpush.bf16.msra.mxu0 %v575
      %731 = vmatpush.bf16.msra.mxu0 %v571
      %732 = vmatmul.bf16.gmra.mxu0 %v603
      %v733 = vpop.f32.mrf.mxu0
      %v734 = vadd.f32 %v475, %v733
      %v735 = vpop.f32.mrf.mxu0
      %v736 = vadd.f32 %v475, %v735
      %737 = vmatmul.bf16.gmra.mxu0 %v606
      %v738 = vpop.f32.mrf.mxu0
      %v739 = vadd.f32 %v475, %v738
      %v740 = vpop.f32.mrf.mxu0
      %v741 = vadd.f32 %v475, %v740
      %742 = vmatmul.bf16.gmra.mxu0 %v609
      %v743 = vpop.f32.mrf.mxu0
      %v744 = vadd.f32 %v475, %v743
      %v745 = vpop.f32.mrf.mxu0
      %v746 = vadd.f32 %v475, %v745
      %747 = vmatmul.bf16.gmra.mxu0 %v612
      %v748 = vpop.f32.mrf.mxu0
      %v749 = vadd.f32 %v475, %v748
      %v750 = vpop.f32.mrf.mxu0
      %v751 = vadd.f32 %v475, %v750
      %752 = vmatmul.bf16.gmra.mxu0 %v615
      %v753 = vpop.f32.mrf.mxu0
      %v754 = vadd.f32 %v475, %v753
      %v755 = vpop.f32.mrf.mxu0
      %v756 = vadd.f32 %v475, %v755
      %757 = vmatmul.bf16.gmra.mxu0 %v618
      %v758 = vpop.f32.mrf.mxu0
      %v759 = vadd.f32 %v475, %v758
      %v760 = vpop.f32.mrf.mxu0
      %v761 = vadd.f32 %v475, %v760
      %762 = vmatmul.bf16.gmra.mxu0 %v621
      %v763 = vpop.f32.mrf.mxu0
      %v764 = vadd.f32 %v475, %v763
      %v765 = vpop.f32.mrf.mxu0
      %v766 = vadd.f32 %v475, %v765
      %767 = vmatmul.bf16.gmra.mxu0 %v624
      %v768 = vpop.f32.mrf.mxu0
      %v769 = vadd.f32 %v475, %v768
      %v770 = vpop.f32.mrf.mxu0
      %v771 = vadd.f32 %v475, %v770
      %772 = vdwg.mxu0
      %773 = vmatpush.bf16.msra.mxu0 0
      %774 = vmatpush.bf16.msra.mxu0 0
      %775 = vmatpush.bf16.msra.mxu0 0
      %776 = vmatpush.bf16.msra.mxu0 0
      %777 = vmatpush.bf16.msra.mxu0 %v584
      %778 = vmatpush.bf16.msra.mxu0 %v580
      %779 = vmatpush.bf16.msra.mxu0 %v576
      %780 = vmatpush.bf16.msra.mxu0 %v572
      %781 = vmatmul.bf16.gmra.mxu0 %v603
      %v782 = vpop.f32.mrf.mxu0
      %v783 = vadd.f32 %v476, %v782
      %v784 = vpop.f32.mrf.mxu0
      %v785 = vadd.f32 %v476, %v784
      %786 = vmatmul.bf16.gmra.mxu0 %v606
      %v787 = vpop.f32.mrf.mxu0
      %v788 = vadd.f32 %v476, %v787
      %v789 = vpop.f32.mrf.mxu0
      %v790 = vadd.f32 %v476, %v789
      %791 = vmatmul.bf16.gmra.mxu0 %v609
      %v792 = vpop.f32.mrf.mxu0
      %v793 = vadd.f32 %v476, %v792
      %v794 = vpop.f32.mrf.mxu0
      %v795 = vadd.f32 %v476, %v794
      %796 = vmatmul.bf16.gmra.mxu0 %v612
      %v797 = vpop.f32.mrf.mxu0
      %v798 = vadd.f32 %v476, %v797
      %v799 = vpop.f32.mrf.mxu0
      %v800 = vadd.f32 %v476, %v799
      %801 = vmatmul.bf16.gmra.mxu0 %v615
      %v802 = vpop.f32.mrf.mxu0
      %v803 = vadd.f32 %v476, %v802
      %v804 = vpop.f32.mrf.mxu0
      %v805 = vadd.f32 %v476, %v804
      %806 = vmatmul.bf16.gmra.mxu0 %v618
      %v807 = vpop.f32.mrf.mxu0
      %v808 = vadd.f32 %v476, %v807
      %v809 = vpop.f32.mrf.mxu0
      %v810 = vadd.f32 %v476, %v809
      %811 = vmatmul.bf16.gmra.mxu0 %v621
      %v812 = vpop.f32.mrf.mxu0
      %v813 = vadd.f32 %v476, %v812
      %v814 = vpop.f32.mrf.mxu0
      %v815 = vadd.f32 %v476, %v814
      %816 = vmatmul.bf16.gmra.mxu0 %v624
      %v817 = vpop.f32.mrf.mxu0
      %v818 = vadd.f32 %v476, %v817
      %v819 = vpop.f32.mrf.mxu0
      %v820 = vadd.f32 %v476, %v819
      %821 = vdwg.mxu0
      %v822 = vmax.f32 %v636, 0.0
      %v823 = vmax.f32 %v685, 0.0
      %v824 = vmax.f32 %v734, 0.0
      %v825 = vmax.f32 %v783, 0.0
      %v826 = vmax.f32 %v638, 0.0
      %v827 = vmax.f32 %v687, 0.0
      %v828 = vmax.f32 %v736, 0.0
      %v829 = vmax.f32 %v785, 0.0
      %v830 = vmax.f32 %v641, 0.0
      %v831 = vmax.f32 %v690, 0.0
      %v832 = vmax.f32 %v739, 0.0
      %v833 = vmax.f32 %v788, 0.0
      %v834 = vmax.f32 %v643, 0.0
      %v835 = vmax.f32 %v692, 0.0
      %v836 = vmax.f32 %v741, 0.0
      %v837 = vmax.f32 %v790, 0.0
      %v838 = vmax.f32 %v646, 0.0
      %v839 = vmax.f32 %v695, 0.0
      %v840 = vmax.f32 %v744, 0.0
      %v841 = vmax.f32 %v793, 0.0
      %v842 = vmax.f32 %v648, 0.0
      %v843 = vmax.f32 %v697, 0.0
      %v844 = vmax.f32 %v746, 0.0
      %v845 = vmax.f32 %v795, 0.0
      %v846 = vmax.f32 %v651, 0.0
      %v847 = vmax.f32 %v700, 0.0
      %v848 = vmax.f32 %v749, 0.0
      %v849 = vmax.f32 %v798, 0.0
      %v850 = vmax.f32 %v653, 0.0
      %v851 = vmax.f32 %v702, 0.0
      %v852 = vmax.f32 %v751, 0.0
      %v853 = vmax.f32 %v800, 0.0
      %v854 = vmax.f32 %v656, 0.0
      %v855 = vmax.f32 %v705, 0.0
      %v856 = vmax.f32 %v754, 0.0
      %v857 = vmax.f32 %v803, 0.0
      %v858 = vmax.f32 %v658, 0.0
      %v859 = vmax.f32 %v707, 0.0
      %v860 = vmax.f32 %v756, 0.0
      %v861 = vmax.f32 %v805, 0.0
      %v862 = vmax.f32 %v661, 0.0
      %v863 = vmax.f32 %v710, 0.0
      %v864 = vmax.f32 %v759, 0.0
      %v865 = vmax.f32 %v808, 0.0
      %v866 = vmax.f32 %v663, 0.0
      %v867 = vmax.f32 %v712, 0.0
      %v868 = vmax.f32 %v761, 0.0
      %v869 = vmax.f32 %v810, 0.0
      %v870 = vmax.f32 %v666, 0.0
      %v871 = vmax.f32 %v715, 0.0
      %v872 = vmax.f32 %v764, 0.0
      %v873 = vmax.f32 %v813, 0.0
      %v874 = vmax.f32 %v668, 0.0
      %v875 = vmax.f32 %v717, 0.0
      %v876 = vmax.f32 %v766, 0.0
      %v877 = vmax.f32 %v815, 0.0
      %v878 = vmax.f32 %v671, 0.0
      %v879 = vmax.f32 %v720, 0.0
      %v880 = vmax.f32 %v769, 0.0
      %v881 = vmax.f32 %v818, 0.0
      %v882 = vmax.f32 %v673, 0.0
      %v883 = vmax.f32 %v722, 0.0
      %v884 = vmax.f32 %v771, 0.0
      %v885 = vmax.f32 %v820, 0.0
      %v886 = vpack.c.bf16 %v826, %v822
      %v887 = vpack.c.bf16 %v827, %v823
      %v888 = vpack.c.bf16 %v828, %v824
      %v889 = vpack.c.bf16 %v829, %v825
      %v890 = vpack.c.bf16 %v834, %v830
      %v891 = vpack.c.bf16 %v835, %v831
      %v892 = vpack.c.bf16 %v836, %v832
      %v893 = vpack.c.bf16 %v837, %v833
      %v894 = vpack.c.bf16 %v842, %v838
      %v895 = vpack.c.bf16 %v843, %v839
      %v896 = vpack.c.bf16 %v844, %v840
      %v897 = vpack.c.bf16 %v845, %v841
      %v898 = vpack.c.bf16 %v850, %v846
      %v899 = vpack.c.bf16 %v851, %v847
      %v900 = vpack.c.bf16 %v852, %v848
      %v901 = vpack.c.bf16 %v853, %v849
      %v902 = vpack.c.bf16 %v858, %v854
      %v903 = vpack.c.bf16 %v859, %v855
      %v904 = vpack.c.bf16 %v860, %v856
      %v905 = vpack.c.bf16 %v861, %v857
      %v906 = vpack.c.bf16 %v866, %v862
      %v907 = vpack.c.bf16 %v867, %v863
      %v908 = vpack.c.bf16 %v868, %v864
      %v909 = vpack.c.bf16 %v869, %v865
      %v910 = vpack.c.bf16 %v874, %v870
      %v911 = vpack.c.bf16 %v875, %v871
      %v912 = vpack.c.bf16 %v876, %v872
      %v913 = vpack.c.bf16 %v877, %v873
      %v914 = vpack.c.bf16 %v882, %v878
      %v915 = vpack.c.bf16 %v883, %v879
      %v916 = vpack.c.bf16 %v884, %v880
      %v917 = vpack.c.bf16 %v885, %v881
      %v918 = vld [vmem:[%s4] sm:$0xf]
      %v919 = vld [vmem:[%s4 + $0x4] sm:$0xf]
      %v920 = vld [vmem:[%s4 + $0x8] sm:$0xf]
      %v921 = vld [vmem:[%s4 + $0xc] sm:$0xf]
      %v922 = vld [vmem:[%s4 + $0x10] sm:$0xf]
      %v923 = vld [vmem:[%s4 + $0x14] sm:$0xf]
      %v924 = vld [vmem:[%s4 + $0x18] sm:$0xf]
      %v925 = vld [vmem:[%s4 + $0x1c] sm:$0xf]
      %v926 = vld [vmem:[%s4 + $0x20] sm:$0xf]
      %v927 = vld [vmem:[%s4 + $0x24] sm:$0xf]
      %v928 = vld [vmem:[%s4 + $0x28] sm:$0xf]
      %v929 = vld [vmem:[%s4 + $0x2c] sm:$0xf]
      %v930 = vld [vmem:[%s4 + $0x30] sm:$0xf]
      %v931 = vld [vmem:[%s4 + $0x34] sm:$0xf]
      %v932 = vld [vmem:[%s4 + $0x38] sm:$0xf]
      %v933 = vld [vmem:[%s4 + $0x3c] sm:$0xf]
      %v934 = vld [vmem:[%s4 + $0x40] sm:$0xf]
      %v935 = vld [vmem:[%s4 + $0x44] sm:$0xf]
      %v936 = vld [vmem:[%s4 + $0x48] sm:$0xf]
      %v937 = vld [vmem:[%s4 + $0x4c] sm:$0xf]
      %v938 = vld [vmem:[%s4 + $0x50] sm:$0xf]
      %v939 = vld [vmem:[%s4 + $0x54] sm:$0xf]
      %v940 = vld [vmem:[%s4 + $0x58] sm:$0xf]
      %v941 = vld [vmem:[%s4 + $0x5c] sm:$0xf]
      %v942 = vld [vmem:[%s4 + $0x60] sm:$0xf]
      %v943 = vld [vmem:[%s4 + $0x64] sm:$0xf]
      %v944 = vld [vmem:[%s4 + $0x68] sm:$0xf]
      %v945 = vld [vmem:[%s4 + $0x6c] sm:$0xf]
      %v946 = vld [vmem:[%s4 + $0x70] sm:$0xf]
      %v947 = vld [vmem:[%s4 + $0x74] sm:$0xf]
      %v948 = vld [vmem:[%s4 + $0x78] sm:$0xf]
      %v949 = vld [vmem:[%s4 + $0x7c] sm:$0xf]
      %v950 = vld [vmem:[%s4 + $0x80] sm:$0xf]
      %v951 = vld [vmem:[%s4 + $0x84] sm:$0xf]
      %v952 = vld [vmem:[%s4 + $0x88] sm:$0xf]
      %v953 = vld [vmem:[%s4 + $0x8c] sm:$0xf]
      %v954 = vld [vmem:[%s4 + $0x90] sm:$0xf]
      %v955 = vld [vmem:[%s4 + $0x94] sm:$0xf]
      %v956 = vld [vmem:[%s4 + $0x98] sm:$0xf]
      %v957 = vld [vmem:[%s4 + $0x9c] sm:$0xf]
      %v958 = vld [vmem:[%s4 + $0xa0] sm:$0xf]
      %v959 = vld [vmem:[%s4 + $0xa4] sm:$0xf]
      %v960 = vld [vmem:[%s4 + $0xa8] sm:$0xf]
      %v961 = vld [vmem:[%s4 + $0xac] sm:$0xf]
      %v962 = vld [vmem:[%s4 + $0xb0] sm:$0xf]
      %v963 = vld [vmem:[%s4 + $0xb4] sm:$0xf]
      %v964 = vld [vmem:[%s4 + $0xb8] sm:$0xf]
      %v965 = vld [vmem:[%s4 + $0xbc] sm:$0xf]
      %v966 = vld [vmem:[%s4 + $0xc0] sm:$0xf]
      %v967 = vld [vmem:[%s4 + $0xc4] sm:$0xf]
      %v968 = vld [vmem:[%s4 + $0xc8] sm:$0xf]
      %v969 = vld [vmem:[%s4 + $0xcc] sm:$0xf]
      %v970 = vld [vmem:[%s4 + $0xd0] sm:$0xf]
      %v971 = vld [vmem:[%s4 + $0xd4] sm:$0xf]
      %v972 = vld [vmem:[%s4 + $0xd8] sm:$0xf]
      %v973 = vld [vmem:[%s4 + $0xdc] sm:$0xf]
      %v974 = vld [vmem:[%s4 + $0xe0] sm:$0xf]
      %v975 = vld [vmem:[%s4 + $0xe4] sm:$0xf]
      %v976 = vld [vmem:[%s4 + $0xe8] sm:$0xf]
      %v977 = vld [vmem:[%s4 + $0xec] sm:$0xf]
      %v978 = vld [vmem:[%s4 + $0xf0] sm:$0xf]
      %v979 = vld [vmem:[%s4 + $0xf4] sm:$0xf]
      %v980 = vld [vmem:[%s4 + $0xf8] sm:$0xf]
      %v981 = vld [vmem:[%s4 + $0xfc] sm:$0xf]
      %v982 = vld [vmem:[%s5] sm:$0x1]
      %v984 = vperm.slane %v982, 0
      %v1050 = vunpack.c.l.b16 %v918
      %v1051 = vunpack.c.l.b16 %v919
      %v1052 = vunpack.c.l.b16 %v920
      %v1053 = vunpack.c.l.b16 %v921
      %v1054 = vunpack.c.l.b16 %v922
      %v1055 = vunpack.c.l.b16 %v923
      %v1056 = vunpack.c.l.b16 %v924
      %v1057 = vunpack.c.l.b16 %v925
      %v1058 = vunpack.c.l.b16 %v926
      %v1059 = vunpack.c.l.b16 %v927
      %v1060 = vunpack.c.l.b16 %v928
      %v1061 = vunpack.c.l.b16 %v929
      %v1062 = vunpack.c.l.b16 %v930
      %v1063 = vunpack.c.l.b16 %v931
      %v1064 = vunpack.c.l.b16 %v932
      %v1065 = vunpack.c.l.b16 %v933
      %v1066 = vunpack.c.l.b16 %v934
      %v1067 = vunpack.c.l.b16 %v935
      %v1068 = vunpack.c.l.b16 %v936
      %v1069 = vunpack.c.l.b16 %v937
      %v1070 = vunpack.c.l.b16 %v938
      %v1071 = vunpack.c.l.b16 %v939
      %v1072 = vunpack.c.l.b16 %v940
      %v1073 = vunpack.c.l.b16 %v941
      %v1074 = vunpack.c.l.b16 %v942
      %v1075 = vunpack.c.l.b16 %v943
      %v1076 = vunpack.c.l.b16 %v944
      %v1077 = vunpack.c.l.b16 %v945
      %v1078 = vunpack.c.l.b16 %v946
      %v1079 = vunpack.c.l.b16 %v947
      %v1080 = vunpack.c.l.b16 %v948
      %v1081 = vunpack.c.l.b16 %v949
      %v1082 = vunpack.c.l.b16 %v950
      %v1083 = vunpack.c.l.b16 %v951
      %v1084 = vunpack.c.l.b16 %v952
      %v1085 = vunpack.c.l.b16 %v953
      %v1086 = vunpack.c.l.b16 %v954
      %v1087 = vunpack.c.l.b16 %v955
      %v1088 = vunpack.c.l.b16 %v956
      %v1089 = vunpack.c.l.b16 %v957
      %v1090 = vunpack.c.l.b16 %v958
      %v1091 = vunpack.c.l.b16 %v959
      %v1092 = vunpack.c.l.b16 %v960
      %v1093 = vunpack.c.l.b16 %v961
      %v1094 = vunpack.c.l.b16 %v962
      %v1095 = vunpack.c.l.b16 %v963
      %v1096 = vunpack.c.l.b16 %v964
      %v1097 = vunpack.c.l.b16 %v965
      %v1098 = vunpack.c.l.b16 %v966
      %v1099 = vunpack.c.l.b16 %v967
      %v1100 = vunpack.c.l.b16 %v968
      %v1101 = vunpack.c.l.b16 %v969
      %v1102 = vunpack.c.l.b16 %v970
      %v1103 = vunpack.c.l.b16 %v971
      %v1104 = vunpack.c.l.b16 %v972
      %v1105 = vunpack.c.l.b16 %v973
      %v1106 = vunpack.c.l.b16 %v974
      %v1107 = vunpack.c.l.b16 %v975
      %v1108 = vunpack.c.l.b16 %v976
      %v1109 = vunpack.c.l.b16 %v977
      %v1110 = vunpack.c.l.b16 %v978
      %v1111 = vunpack.c.l.b16 %v979
      %v1112 = vunpack.c.l.b16 %v980
      %v1113 = vunpack.c.l.b16 %v981
      %v1114 = vpack.c.b16 %v1051, %v1050
      %v1115 = vpack.c.b16 %v1053, %v1052
      %v1116 = vpack.c.b16 %v1055, %v1054
      %v1117 = vpack.c.b16 %v1057, %v1056
      %v1118 = vpack.c.b16 %v1059, %v1058
      %v1119 = vpack.c.b16 %v1061, %v1060
      %v1120 = vpack.c.b16 %v1063, %v1062
      %v1121 = vpack.c.b16 %v1065, %v1064
      %v1122 = vpack.c.b16 %v1067, %v1066
      %v1123 = vpack.c.b16 %v1069, %v1068
      %v1124 = vpack.c.b16 %v1071, %v1070
      %v1125 = vpack.c.b16 %v1073, %v1072
      %v1126 = vpack.c.b16 %v1075, %v1074
      %v1127 = vpack.c.b16 %v1077, %v1076
      %v1128 = vpack.c.b16 %v1079, %v1078
      %v1129 = vpack.c.b16 %v1081, %v1080
      %v1130 = vpack.c.b16 %v1083, %v1082
      %v1131 = vpack.c.b16 %v1085, %v1084
      %v1132 = vpack.c.b16 %v1087, %v1086
      %v1133 = vpack.c.b16 %v1089, %v1088
      %v1134 = vpack.c.b16 %v1091, %v1090
      %v1135 = vpack.c.b16 %v1093, %v1092
      %v1136 = vpack.c.b16 %v1095, %v1094
      %v1137 = vpack.c.b16 %v1097, %v1096
      %v1138 = vpack.c.b16 %v1099, %v1098
      %v1139 = vpack.c.b16 %v1101, %v1100
      %v1140 = vpack.c.b16 %v1103, %v1102
      %v1141 = vpack.c.b16 %v1105, %v1104
      %v1142 = vpack.c.b16 %v1107, %v1106
      %v1143 = vpack.c.b16 %v1109, %v1108
      %v1144 = vpack.c.b16 %v1111, %v1110
      %v1145 = vpack.c.b16 %v1113, %v1112
      %1178 = vmatpush.bf16.msra.mxu0 %v1121
      %1179 = vmatpush.bf16.msra.mxu0 %v1120
      %1180 = vmatpush.bf16.msra.mxu0 %v1119
      %1181 = vmatpush.bf16.msra.mxu0 %v1118
      %1182 = vmatpush.bf16.msra.mxu0 %v1117
      %1183 = vmatpush.bf16.msra.mxu0 %v1116
      %1184 = vmatpush.bf16.msra.mxu0 %v1115
      %1185 = vmatpush.bf16.msra.mxu0 %v1114
      %1186 = vmatmul.bf16.gmra.mxu0 %v886
      %v1187 = vpop.f32.mrf.mxu0
      %v1188 = vadd.f32 %v984, %v1187
      %v1189 = vpop.f32.mrf.mxu0
      %v1190 = vadd.f32 %v984, %v1189
      %1191 = vmatmul.bf16.gmra.mxu0 %v890
      %v1192 = vpop.f32.mrf.mxu0
      %v1193 = vadd.f32 %v984, %v1192
      %v1194 = vpop.f32.mrf.mxu0
      %v1195 = vadd.f32 %v984, %v1194
      %1196 = vmatmul.bf16.gmra.mxu0 %v894
      %v1197 = vpop.f32.mrf.mxu0
      %v1198 = vadd.f32 %v984, %v1197
      %v1199 = vpop.f32.mrf.mxu0
      %v1200 = vadd.f32 %v984, %v1199
      %1201 = vmatmul.bf16.gmra.mxu0 %v898
      %v1202 = vpop.f32.mrf.mxu0
      %v1203 = vadd.f32 %v984, %v1202
      %v1204 = vpop.f32.mrf.mxu0
      %v1205 = vadd.f32 %v984, %v1204
      %1206 = vmatmul.bf16.gmra.mxu0 %v902
      %v1207 = vpop.f32.mrf.mxu0
      %v1208 = vadd.f32 %v984, %v1207
      %v1209 = vpop.f32.mrf.mxu0
      %v1210 = vadd.f32 %v984, %v1209
      %1211 = vmatmul.bf16.gmra.mxu0 %v906
      %v1212 = vpop.f32.mrf.mxu0
      %v1213 = vadd.f32 %v984, %v1212
      %v1214 = vpop.f32.mrf.mxu0
      %v1215 = vadd.f32 %v984, %v1214
      %1216 = vmatmul.bf16.gmra.mxu0 %v910
      %v1217 = vpop.f32.mrf.mxu0
      %v1218 = vadd.f32 %v984, %v1217
      %v1219 = vpop.f32.mrf.mxu0
      %v1220 = vadd.f32 %v984, %v1219
      %1221 = vmatmul.bf16.gmra.mxu0 %v914
      %v1222 = vpop.f32.mrf.mxu0
      %v1223 = vadd.f32 %v984, %v1222
      %v1224 = vpop.f32.mrf.mxu0
      %v1225 = vadd.f32 %v984, %v1224
      %1226 = vdwg.mxu0
      %1227 = vmatpush.bf16.msra.mxu0 %v1129
      %1228 = vmatpush.bf16.msra.mxu0 %v1128
      %1229 = vmatpush.bf16.msra.mxu0 %v1127
      %1230 = vmatpush.bf16.msra.mxu0 %v1126
      %1231 = vmatpush.bf16.msra.mxu0 %v1125
      %1232 = vmatpush.bf16.msra.mxu0 %v1124
      %1233 = vmatpush.bf16.msra.mxu0 %v1123
      %1234 = vmatpush.bf16.msra.mxu0 %v1122
      %1235 = vmatmul.bf16.gmra.mxu0 %v887
      %v1236 = vpop.f32.mrf.mxu0
      %v1237 = vadd.f32 %v1188, %v1236
      %v1238 = vpop.f32.mrf.mxu0
      %v1239 = vadd.f32 %v1190, %v1238
      %1240 = vmatmul.bf16.gmra.mxu0 %v891
      %v1241 = vpop.f32.mrf.mxu0
      %v1242 = vadd.f32 %v1193, %v1241
      %v1243 = vpop.f32.mrf.mxu0
      %v1244 = vadd.f32 %v1195, %v1243
      %1245 = vmatmul.bf16.gmra.mxu0 %v895
      %v1246 = vpop.f32.mrf.mxu0
      %v1247 = vadd.f32 %v1198, %v1246
      %v1248 = vpop.f32.mrf.mxu0
      %v1249 = vadd.f32 %v1200, %v1248
      %1250 = vmatmul.bf16.gmra.mxu0 %v899
      %v1251 = vpop.f32.mrf.mxu0
      %v1252 = vadd.f32 %v1203, %v1251
      %v1253 = vpop.f32.mrf.mxu0
      %v1254 = vadd.f32 %v1205, %v1253
      %1255 = vmatmul.bf16.gmra.mxu0 %v903
      %v1256 = vpop.f32.mrf.mxu0
      %v1257 = vadd.f32 %v1208, %v1256
      %v1258 = vpop.f32.mrf.mxu0
      %v1259 = vadd.f32 %v1210, %v1258
      %1260 = vmatmul.bf16.gmra.mxu0 %v907
      %v1261 = vpop.f32.mrf.mxu0
      %v1262 = vadd.f32 %v1213, %v1261
      %v1263 = vpop.f32.mrf.mxu0
      %v1264 = vadd.f32 %v1215, %v1263
      %1265 = vmatmul.bf16.gmra.mxu0 %v911
      %v1266 = vpop.f32.mrf.mxu0
      %v1267 = vadd.f32 %v1218, %v1266
      %v1268 = vpop.f32.mrf.mxu0
      %v1269 = vadd.f32 %v1220, %v1268
      %1270 = vmatmul.bf16.gmra.mxu0 %v915
      %v1271 = vpop.f32.mrf.mxu0
      %v1272 = vadd.f32 %v1223, %v1271
      %v1273 = vpop.f32.mrf.mxu0
      %v1274 = vadd.f32 %v1225, %v1273
      %1275 = vdwg.mxu0
      %1276 = vmatpush.bf16.msra.mxu0 %v1137
      %1277 = vmatpush.bf16.msra.mxu0 %v1136
      %1278 = vmatpush.bf16.msra.mxu0 %v1135
      %1279 = vmatpush.bf16.msra.mxu0 %v1134
      %1280 = vmatpush.bf16.msra.mxu0 %v1133
      %1281 = vmatpush.bf16.msra.mxu0 %v1132
      %1282 = vmatpush.bf16.msra.mxu0 %v1131
      %1283 = vmatpush.bf16.msra.mxu0 %v1130
      %1284 = vmatmul.bf16.gmra.mxu0 %v888
      %v1285 = vpop.f32.mrf.mxu0
      %v1286 = vadd.f32 %v1237, %v1285
      %v1287 = vpop.f32.mrf.mxu0
      %v1288 = vadd.f32 %v1239, %v1287
      %1289 = vmatmul.bf16.gmra.mxu0 %v892
      %v1290 = vpop.f32.mrf.mxu0
      %v1291 = vadd.f32 %v1242, %v1290
      %v1292 = vpop.f32.mrf.mxu0
      %v1293 = vadd.f32 %v1244, %v1292
      %1294 = vmatmul.bf16.gmra.mxu0 %v896
      %v1295 = vpop.f32.mrf.mxu0
      %v1296 = vadd.f32 %v1247, %v1295
      %v1297 = vpop.f32.mrf.mxu0
      %v1298 = vadd.f32 %v1249, %v1297
      %1299 = vmatmul.bf16.gmra.mxu0 %v900
      %v1300 = vpop.f32.mrf.mxu0
      %v1301 = vadd.f32 %v1252, %v1300
      %v1302 = vpop.f32.mrf.mxu0
      %v1303 = vadd.f32 %v1254, %v1302
      %1304 = vmatmul.bf16.gmra.mxu0 %v904
      %v1305 = vpop.f32.mrf.mxu0
      %v1306 = vadd.f32 %v1257, %v1305
      %v1307 = vpop.f32.mrf.mxu0
      %v1308 = vadd.f32 %v1259, %v1307
      %1309 = vmatmul.bf16.gmra.mxu0 %v908
      %v1310 = vpop.f32.mrf.mxu0
      %v1311 = vadd.f32 %v1262, %v1310
      %v1312 = vpop.f32.mrf.mxu0
      %v1313 = vadd.f32 %v1264, %v1312
      %1314 = vmatmul.bf16.gmra.mxu0 %v912
      %v1315 = vpop.f32.mrf.mxu0
      %v1316 = vadd.f32 %v1267, %v1315
      %v1317 = vpop.f32.mrf.mxu0
      %v1318 = vadd.f32 %v1269, %v1317
      %1319 = vmatmul.bf16.gmra.mxu0 %v916
      %v1320 = vpop.f32.mrf.mxu0
      %v1321 = vadd.f32 %v1272, %v1320
      %v1322 = vpop.f32.mrf.mxu0
      %v1323 = vadd.f32 %v1274, %v1322
      %1324 = vdwg.mxu0
      %1325 = vmatpush.bf16.msra.mxu0 %v1145
      %1326 = vmatpush.bf16.msra.mxu0 %v1144
      %1327 = vmatpush.bf16.msra.mxu0 %v1143
      %1328 = vmatpush.bf16.msra.mxu0 %v1142
      %1329 = vmatpush.bf16.msra.mxu0 %v1141
      %1330 = vmatpush.bf16.msra.mxu0 %v1140
      %1331 = vmatpush.bf16.msra.mxu0 %v1139
      %1332 = vmatpush.bf16.msra.mxu0 %v1138
      %1333 = vmatmul.bf16.gmra.mxu0 %v889
      %v1334 = vpop.f32.mrf.mxu0
      %v1335 = vadd.f32 %v1286, %v1334
      %v1336 = vpop.f32.mrf.mxu0
      %v1337 = vadd.f32 %v1288, %v1336
      %1338 = vmatmul.bf16.gmra.mxu0 %v893
      %v1339 = vpop.f32.mrf.mxu0
      %v1340 = vadd.f32 %v1291, %v1339
      %v1341 = vpop.f32.mrf.mxu0
      %v1342 = vadd.f32 %v1293, %v1341
      %1343 = vmatmul.bf16.gmra.mxu0 %v897
      %v1344 = vpop.f32.mrf.mxu0
      %v1345 = vadd.f32 %v1296, %v1344
      %v1346 = vpop.f32.mrf.mxu0
      %v1347 = vadd.f32 %v1298, %v1346
      %1348 = vmatmul.bf16.gmra.mxu0 %v901
      %v1349 = vpop.f32.mrf.mxu0
      %v1350 = vadd.f32 %v1301, %v1349
      %v1351 = vpop.f32.mrf.mxu0
      %v1352 = vadd.f32 %v1303, %v1351
      %1353 = vmatmul.bf16.gmra.mxu0 %v905
      %v1354 = vpop.f32.mrf.mxu0
      %v1355 = vadd.f32 %v1306, %v1354
      %v1356 = vpop.f32.mrf.mxu0
      %v1357 = vadd.f32 %v1308, %v1356
      %1358 = vmatmul.bf16.gmra.mxu0 %v909
      %v1359 = vpop.f32.mrf.mxu0
      %v1360 = vadd.f32 %v1311, %v1359
      %v1361 = vpop.f32.mrf.mxu0
      %v1362 = vadd.f32 %v1313, %v1361
      %1363 = vmatmul.bf16.gmra.mxu0 %v913
      %v1364 = vpop.f32.mrf.mxu0
      %v1365 = vadd.f32 %v1316, %v1364
      %v1366 = vpop.f32.mrf.mxu0
      %v1367 = vadd.f32 %v1318, %v1366
      %1368 = vmatmul.bf16.gmra.mxu0 %v917
      %v1369 = vpop.f32.mrf.mxu0
      %v1370 = vadd.f32 %v1321, %v1369
      %v1371 = vpop.f32.mrf.mxu0
      %v1372 = vadd.f32 %v1323, %v1371
      %1373 = vdwg.mxu0
      %v1374 = vtanh.pop %v1335
      %v1375 = vtanh.pop %v1337
      %v1376 = vtanh.pop %v1340
      %v1377 = vtanh.pop %v1342
      %v1378 = vtanh.pop %v1345
      %v1379 = vtanh.pop %v1347
      %v1380 = vtanh.pop %v1350
      %v1381 = vtanh.pop %v1352
      %v1382 = vtanh.pop %v1355
      %v1383 = vtanh.pop %v1357
      %v1384 = vtanh.pop %v1360
      %v1385 = vtanh.pop %v1362
      %v1386 = vtanh.pop %v1365
      %v1387 = vtanh.pop %v1367
      %v1388 = vtanh.pop %v1370
      %v1389 = vtanh.pop %v1372
      %v1390 = vld [vmem:[%s6] sm:$0x1]
      %v1392 = vperm.slane %v1390, 0
      %v1394 = vmul.f32 %v1374, %v1392
      %v1395 = vmul.f32 %v1375, %v1392
      %v1396 = vmul.f32 %v1376, %v1392
      %v1397 = vmul.f32 %v1377, %v1392
      %v1398 = vmul.f32 %v1378, %v1392
      %v1399 = vmul.f32 %v1379, %v1392
      %v1400 = vmul.f32 %v1380, %v1392
      %v1401 = vmul.f32 %v1381, %v1392
      %v1402 = vmul.f32 %v1382, %v1392
      %v1403 = vmul.f32 %v1383, %v1392
      %v1404 = vmul.f32 %v1384, %v1392
      %v1405 = vmul.f32 %v1385, %v1392
      %v1406 = vmul.f32 %v1386, %v1392
      %v1407 = vmul.f32 %v1387, %v1392
      %v1408 = vmul.f32 %v1388, %v1392
      %v1409 = vmul.f32 %v1389, %v1392
      %1410 = vadd.xlane.f32.xlu0 %v1394
      %v1411 = vpop.xlane.xlu0 %1410
      %1412 = vadd.xlane.f32.xlu0 %v1395
      %v1413 = vpop.xlane.xlu0 %1412
      %1414 = vadd.xlane.f32.xlu0 %v1396
      %v1415 = vpop.xlane.xlu0 %1414
      %1416 = vadd.xlane.f32.xlu0 %v1397
      %v1417 = vpop.xlane.xlu0 %1416
      %1418 = vadd.xlane.f32.xlu0 %v1398
      %v1419 = vpop.xlane.xlu0 %1418
      %1420 = vadd.xlane.f32.xlu0 %v1399
      %v1421 = vpop.xlane.xlu0 %1420
      %1422 = vadd.xlane.f32.xlu0 %v1400
      %v1423 = vpop.xlane.xlu0 %1422
      %1424 = vadd.xlane.f32.xlu0 %v1401
      %v1425 = vpop.xlane.xlu0 %1424
      %1426 = vadd.xlane.f32.xlu0 %v1402
      %v1427 = vpop.xlane.xlu0 %1426
      %1428 = vadd.xlane.f32.xlu0 %v1403
      %v1429 = vpop.xlane.xlu0 %1428
      %1430 = vadd.xlane.f32.xlu0 %v1404
      %v1431 = vpop.xlane.xlu0 %1430
      %1432 = vadd.xlane.f32.xlu0 %v1405
      %v1433 = vpop.xlane.xlu0 %1432
      %1434 = vadd.xlane.f32.xlu0 %v1406
      %v1435 = vpop.xlane.xlu0 %1434
      %1436 = vadd.xlane.f32.xlu0 %v1407
      %v1437 = vpop.xlane.xlu0 %1436
      %1438 = vadd.xlane.f32.xlu0 %v1408
      %v1439 = vpop.xlane.xlu0 %1438
      %1440 = vadd.xlane.f32.xlu0 %v1409
      %v1441 = vpop.xlane.xlu0 %1440
      %v1442 = vld [vmem:[#allocation7] sm:$0x1]
      %v1444 = vperm.slane %v1442, 0
      %v1446 = vadd.f32 %v1411, %v1444
      %v1447 = vadd.f32 %v1413, %v1444
      %v1448 = vadd.f32 %v1415, %v1444
      %v1449 = vadd.f32 %v1417, %v1444
      %v1450 = vadd.f32 %v1419, %v1444
      %v1451 = vadd.f32 %v1421, %v1444
      %v1452 = vadd.f32 %v1423, %v1444
      %v1453 = vadd.f32 %v1425, %v1444
      %v1454 = vadd.f32 %v1427, %v1444
      %v1455 = vadd.f32 %v1429, %v1444
      %v1456 = vadd.f32 %v1431, %v1444
      %v1457 = vadd.f32 %v1433, %v1444
      %v1458 = vadd.f32 %v1435, %v1444
      %v1459 = vadd.f32 %v1437, %v1444
      %v1460 = vadd.f32 %v1439, %v1444
      %v1461 = vadd.f32 %v1441, %v1444
      %1478 = vset.pattern.permute.xlu0 0
      %1479 = vperm.xlu0 %1478, %v1446
      %v1480 = vpop.permute.xlu0 %1479
      %1481 = vset.pattern.permute.xlu0 0
      %1482 = vperm.xlu0 %1481, %v1447
      %v1483 = vpop.permute.xlu0 %1482
      %1484 = vset.pattern.permute.xlu0 0
      %1485 = vperm.xlu0 %1484, %v1448
      %v1486 = vpop.permute.xlu0 %1485
      %1487 = vset.pattern.permute.xlu0 0
      %1488 = vperm.xlu0 %1487, %v1449
      %v1489 = vpop.permute.xlu0 %1488
      %1490 = vset.pattern.permute.xlu0 0
      %1491 = vperm.xlu0 %1490, %v1450
      %v1492 = vpop.permute.xlu0 %1491
      %1493 = vset.pattern.permute.xlu0 0
      %1494 = vperm.xlu0 %1493, %v1451
      %v1495 = vpop.permute.xlu0 %1494
      %1496 = vset.pattern.permute.xlu0 0
      %1497 = vperm.xlu0 %1496, %v1452
      %v1498 = vpop.permute.xlu0 %1497
      %1499 = vset.pattern.permute.xlu0 0
      %1500 = vperm.xlu0 %1499, %v1453
      %v1501 = vpop.permute.xlu0 %1500
      %1502 = vset.pattern.permute.xlu0 0
      %1503 = vperm.xlu0 %1502, %v1454
      %v1504 = vpop.permute.xlu0 %1503
      %1505 = vset.pattern.permute.xlu0 0
      %1506 = vperm.xlu0 %1505, %v1455
      %v1507 = vpop.permute.xlu0 %1506
      %1508 = vset.pattern.permute.xlu0 0
      %1509 = vperm.xlu0 %1508, %v1456
      %v1510 = vpop.permute.xlu0 %1509
      %1511 = vset.pattern.permute.xlu0 0
      %1512 = vperm.xlu0 %1511, %v1457
      %v1513 = vpop.permute.xlu0 %1512
      %1514 = vset.pattern.permute.xlu0 0
      %1515 = vperm.xlu0 %1514, %v1458
      %v1516 = vpop.permute.xlu0 %1515
      %1517 = vset.pattern.permute.xlu0 0
      %1518 = vperm.xlu0 %1517, %v1459
      %v1519 = vpop.permute.xlu0 %1518
      %1520 = vset.pattern.permute.xlu0 0
      %1521 = vperm.xlu0 %1520, %v1460
      %v1522 = vpop.permute.xlu0 %1521
      %1523 = vset.pattern.permute.xlu0 0
      %1524 = vperm.xlu0 %1523, %v1461
      %v1525 = vpop.permute.xlu0 %1524
      %v1526 = vlaneseq
      %v1527 = vand.u32 %v1526, 127
      %v1528 = vperm.slane %v1480, %v1527
      %v1529 = vadd.s32 %v1527, 4294967288
      %v1530 = vperm.slane %v1483, %v1529
      %vm1531 = vcmask 130112
      %v1532 = vsel %vm1531, %v1530, %v1528
      %v1533 = vadd.s32 %v1527, 4294967280
      %v1534 = vperm.slane %v1486, %v1533
      %vm1535 = vcmask 195712
      %v1536 = vsel %vm1535, %v1534, %v1532
      %v1537 = vadd.s32 %v1527, 4294967272
      %v1538 = vperm.slane %v1489, %v1537
      %vm1539 = vcmask 261312
      %v1540 = vsel %vm1539, %v1538, %v1536
      %v1541 = vadd.s32 %v1527, 4294967264
      %v1542 = vperm.slane %v1492, %v1541
      %vm1543 = vcmask 326912
      %v1544 = vsel %vm1543, %v1542, %v1540
      %v1545 = vadd.s32 %v1527, 4294967256
      %v1546 = vperm.slane %v1495, %v1545
      %vm1547 = vcmask 392512
      %v1548 = vsel %vm1547, %v1546, %v1544
      %v1549 = vadd.s32 %v1527, 4294967248
      %v1550 = vperm.slane %v1498, %v1549
      %vm1551 = vcmask 458112
      %v1552 = vsel %vm1551, %v1550, %v1548
      %v1553 = vadd.s32 %v1527, 4294967240
      %v1554 = vperm.slane %v1501, %v1553
      %vm1555 = vcmask 523712
      %v1556 = vsel %vm1555, %v1554, %v1552
      %v1557 = vadd.s32 %v1527, 4294967232
      %v1558 = vperm.slane %v1504, %v1557
      %vm1559 = vcmask 589312
      %v1560 = vsel %vm1559, %v1558, %v1556
      %v1561 = vadd.s32 %v1527, 4294967224
      %v1562 = vperm.slane %v1507, %v1561
      %vm1563 = vcmask 654912
      %v1564 = vsel %vm1563, %v1562, %v1560
      %v1565 = vadd.s32 %v1527, 4294967216
      %v1566 = vperm.slane %v1510, %v1565
      %vm1567 = vcmask 720512
      %v1568 = vsel %vm1567, %v1566, %v1564
      %v1569 = vadd.s32 %v1527, 4294967208
      %v1570 = vperm.slane %v1513, %v1569
      %vm1571 = vcmask 786112
      %v1572 = vsel %vm1571, %v1570, %v1568
      %v1573 = vadd.s32 %v1527, 4294967200
      %v1574 = vperm.slane %v1516, %v1573
      %vm1575 = vcmask 851712
      %v1576 = vsel %vm1575, %v1574, %v1572
      %v1577 = vadd.s32 %v1527, 4294967192
      %v1578 = vperm.slane %v1519, %v1577
      %vm1579 = vcmask 917312
      %v1580 = vsel %vm1579, %v1578, %v1576
      %v1581 = vadd.s32 %v1527, 4294967184
      %v1582 = vperm.slane %v1522, %v1581
      %vm1583 = vcmask 982912
      %v1584 = vsel %vm1583, %v1582, %v1580
      %v1585 = vadd.s32 %v1527, 4294967176
      %v1586 = vperm.slane %v1525, %v1585
      %vm1587 = vcmask 1048512
      %v1588 = vsel %vm1587, %v1586, %v1584
      %1590 = vst [vmem:[%s412] sm:$0x1] %v1588
      %s1591 = smul.u32 %s30, 2
      %s1592 = sadd.s32 %s1591, %s31
      %s1593 = smul.u32 %s1592, 128
      %v1594 = vstv %s1593
      %v1595 = vadd.s32 %v1594, %v1527
      %v1596 = vstv %s426
      %vm1597 = vcmp.lt.s32.totalorder %v1595, %v1596
      %v1598 = vsel %vm1597, %v1588, -1e+30
      %vm1599 = vcmask 1040384
      %v1600 = vsel %vm1599, %v1598, -inf
      %1601 = vmax.xlane.f32.xlu0 %v1600
      %v1602 = vpop.xlane.xlu0 %1601
      %v1603 = vld [vmem:[#allocation2] sm:$0x1]
      %v1604 = vmax.f32 %v1603, %v1602
      %v1605 = vsub.f32 %v1603, %v1604
      %v1606 = vmul.f32 %v1605, 1.442695
      %v1607 = vpow.pop %v1606
      %1609 = vset.pattern.permute.xlu0 0
      %1610 = vperm.xlu0 %1609, %v1604
      %v1611 = vpop.permute.xlu0 %1610
      %v1613 = vperm.slane %v1611, 0
      %v1614 = vsub.f32 %v1598, %v1613
      %v1615 = vmul.f32 %v1614, 1.442695
      %v1616 = vpow.pop %v1615
      %v1617 = vld [vmem:[#allocation3] sm:$0x1]
      %v1618 = vmul.f32 %v1607, %v1617
      %v1619 = vsel %vm1599, %v1616, 0.0
      %1620 = vadd.xlane.f32.xlu0 %v1619
      %v1621 = vpop.xlane.xlu0 %1620
      %v1622 = vadd.f32 %v1618, %v1621
      %vm1623 = vcmask 0
      %1624 = vst.msk [vmem:[#allocation3] sm:$0x1] %vm1623, %v1622
      %v1625 = vld [vmem:[#allocation4] sm:$0xf]
      %1627 = vset.pattern.permute.xlu0 0
      %1628 = vperm.xlu0 %1627, %v1607
      %v1629 = vpop.permute.xlu0 %1628
      %v1631 = vperm.slane %v1629, 0
      %v1632 = vmul.f32 %v1631, %v1625
      %v1633 = vpack.c.bf16 %v1616, %v1616
      %1634 = vmatpush.bf16.msra.mxu0 %v914
      %1635 = vmatpush.bf16.msra.mxu0 %v910
      %1636 = vmatpush.bf16.msra.mxu0 %v906
      %1637 = vmatpush.bf16.msra.mxu0 %v902
      %1638 = vmatpush.bf16.msra.mxu0 %v898
      %1639 = vmatpush.bf16.msra.mxu0 %v894
      %1640 = vmatpush.bf16.msra.mxu0 %v890
      %1641 = vmatpush.bf16.msra.mxu0 %v886
      %1642 = vmatmul.bf16.gmra.mxu0 %v1633
      %v1643 = vpop.f32.mrf.mxu0
      %v1644 = vadd.f32 0.0, %v1643
      %v1645 = vpop.f32.mrf.mxu0
      %1646 = vdwg.mxu0
      %1647 = vmatpush.bf16.msra.mxu0 %v915
      %1648 = vmatpush.bf16.msra.mxu0 %v911
      %1649 = vmatpush.bf16.msra.mxu0 %v907
      %1650 = vmatpush.bf16.msra.mxu0 %v903
      %1651 = vmatpush.bf16.msra.mxu0 %v899
      %1652 = vmatpush.bf16.msra.mxu0 %v895
      %1653 = vmatpush.bf16.msra.mxu0 %v891
      %1654 = vmatpush.bf16.msra.mxu0 %v887
      %1655 = vmatmul.bf16.gmra.mxu0 %v1633
      %v1656 = vpop.f32.mrf.mxu0
      %v1657 = vadd.f32 0.0, %v1656
      %v1658 = vpop.f32.mrf.mxu0
      %1659 = vdwg.mxu0
      %1660 = vmatpush.bf16.msra.mxu0 %v916
      %1661 = vmatpush.bf16.msra.mxu0 %v912
      %1662 = vmatpush.bf16.msra.mxu0 %v908
      %1663 = vmatpush.bf16.msra.mxu0 %v904
      %1664 = vmatpush.bf16.msra.mxu0 %v900
      %1665 = vmatpush.bf16.msra.mxu0 %v896
      %1666 = vmatpush.bf16.msra.mxu0 %v892
      %1667 = vmatpush.bf16.msra.mxu0 %v888
      %1668 = vmatmul.bf16.gmra.mxu0 %v1633
      %v1669 = vpop.f32.mrf.mxu0
      %v1670 = vadd.f32 0.0, %v1669
      %v1671 = vpop.f32.mrf.mxu0
      %1672 = vdwg.mxu0
      %1673 = vmatpush.bf16.msra.mxu0 %v917
      %1674 = vmatpush.bf16.msra.mxu0 %v913
      %1675 = vmatpush.bf16.msra.mxu0 %v909
      %1676 = vmatpush.bf16.msra.mxu0 %v905
      %1677 = vmatpush.bf16.msra.mxu0 %v901
      %1678 = vmatpush.bf16.msra.mxu0 %v897
      %1679 = vmatpush.bf16.msra.mxu0 %v893
      %1680 = vmatpush.bf16.msra.mxu0 %v889
      %1681 = vmatmul.bf16.gmra.mxu0 %v1633
      %v1682 = vpop.f32.mrf.mxu0
      %v1683 = vadd.f32 0.0, %v1682
      %v1684 = vpop.f32.mrf.mxu0
      %1685 = vdwg.mxu0
      %v1690 = vrot.slane %v1657, 7
      %v1691 = vrot.slane %v1670, 6
      %v1692 = vrot.slane %v1683, 5
      %v1693 = vsel %vm1599, %v1644, %v1690
      %vm1694 = vcmask 1042434
      %v1695 = vsel %vm1694, %v1691, %v1692
      %vm1696 = vcmask 1041408
      %v1697 = vsel %vm1696, %v1693, %v1695
      %v1699 = vadd.f32 %v1632, %v1697
      %v1700 = vlaneseq
      %vm1701 = vcmp.ge.s32.totalorder %v1700, 0
      %vm1702 = vcmp.lt.s32.totalorder %v1700, 512
      %vm1703 = vmand %vm1701, %vm1702
      %1704 = vst.msk [vmem:[#allocation4] sm:$0xf] %vm1703, %v1699
      %1705 = vst.msk [vmem:[#allocation2] sm:$0x1] %vm1623, %v1604
      %p1706 = scmp.eq.s32.totalorder %s31, 1
      // Predicated region
      $region53: #{dattention_forward.1} parent=47 // pred_check
        %p1707 = pneg %p1706
      $region54: #{dattention_forward.1} parent=47 // pred_check_branch
        %1709 = sbr.rel (%p1707) target = $region56
      $region55: #{dattention_forward.1} parent=47 // pred_region
        %v1710 = vld [vmem:[#allocation2] sm:$0x1]
        %1712 = vset.pattern.permute.xlu0 0
        %1713 = vperm.xlu0 %1712, %v1710
        %v1714 = vpop.permute.xlu0 %1713
        %v1716 = vperm.slane %v1714, 0
        %1717 = vst [vmem:[%s417] sm:$0x1] %v1716
        %v1718 = vld [vmem:[#allocation3] sm:$0x1]
        %1720 = vset.pattern.permute.xlu0 0
        %1721 = vperm.xlu0 %1720, %v1718
        %v1722 = vpop.permute.xlu0 %1721
        %v1724 = vperm.slane %v1722, 0
        %1725 = vst [vmem:[%s420] sm:$0x1] %v1724
        %v1726 = vld [vmem:[#allocation4] sm:$0xf]
        %1727 = vst.msk [vmem:[%s424] sm:$0xf] %vm1703, %v1726
      $region56: #{dattention_forward.1} parent=47 // pred_fallthru
        _
      %s1728 = smul.u32 %s30, 2
      %s1729 = sadd.s32 %s1728, %s31
      %p1730 = scmp.lt.s32.totalorder %s1729, 3
      %s1731 = scalar_select %p1730, %s1729, 3
      %s1732 = scalar_lea.vmem %s8, %s1731
      %p1733 = scmp.lt.s32.totalorder %s30, 1
      %s1734 = scalar_select %p1733, %s30, 1
      %s1735 = scalar_lea.vmem %s9, %s1734
      %p1736 = scmp.lt.s32.totalorder %s30, 1
      %s1737 = scalar_select %p1736, %s30, 1
      %s1738 = scalar_lea.vmem %s10, %s1737
      %p1739 = scmp.lt.s32.totalorder %s30, 1
      %s1740 = scalar_select %p1739, %s30, 1
      %s1741 = smul.addr %s1740, 4
      %s1742 = scalar_lea.vmem %s11, %s1741
      // Predicated region
      $region57: #{dattention_forward.1} parent=47 // pred_check
        %p1743 = pneg %p216
      $region58: #{dattention_forward.1} parent=47 // pred_check_branch
        %1745 = sbr.rel (%p1743) target = $region60
      $region59: #{dattention_forward.1} parent=47 // pred_region
        %s1746 = smul.u32 %s30, 2
        %s1747 = sadd.s32 %s1746, %s31
      $region60: #{dattention_forward.1} parent=47 // pred_fallthru
        _
      // Predicated region
      $region61: #{dattention_forward.1} parent=47 // pred_check
        %p1748 = pneg %p242
      $region62: #{dattention_forward.1} parent=47 // pred_check_branch
        %1750 = sbr.rel (%p1748) target = $region64
      $region63: #{dattention_forward.1} parent=47 // pred_region
        _
      $region64: #{dattention_forward.1} parent=47 // pred_fallthru
        _
      // Predicated region
      $region65: #{dattention_forward.1} parent=47 // pred_check
        %p1751 = pneg %p268
      $region66: #{dattention_forward.1} parent=47 // pred_check_branch
        %1753 = sbr.rel (%p1751) target = $region68
      $region67: #{dattention_forward.1} parent=47 // pred_region
        _
      $region68: #{dattention_forward.1} parent=47 // pred_fallthru
        _
      // Predicated region
      $region69: #{dattention_forward.1} parent=47 // pred_check
        %p1754 = pneg %p294
      $region70: #{dattention_forward.1} parent=47 // pred_check_branch
        %1756 = sbr.rel (%p1754) target = $region72
      $region71: #{dattention_forward.1} parent=47 // pred_region
        _
      $region72: #{dattention_forward.1} parent=47 // pred_fallthru
        _
    $region48: #{dattention_forward.1} parent=5 // pred_fallthru
      _
    %p1757 = scmp.le.s32.totalorder 2, %s21
    // Predicated region
    $region73: #{dattention_forward.1} parent=5 // pred_check
      %p1758 = pneg %p1757
    $region74: #{dattention_forward.1} parent=5 // pred_check_branch
      %1760 = sbr.rel (%p1758) target = $region76
    $region75: #{dattention_forward.1} parent=5 // pred_region
      %s1761 = ssub.s32 %s21, 2
      // Predicated region
      $region77: #{dattention_forward.1} parent=75 // pred_check
        %p1762 = pneg %p222
      $region78: #{dattention_forward.1} parent=75 // pred_check_branch
        %1764 = sbr.rel (%p1762) target = $region80
      $region79: #{dattention_forward.1} parent=75 // pred_region
        %s1765 = smul.u32 %s32, 2
        %s1766 = sadd.s32 %s1765, %s33
        %p1767 = scmp.lt.s32.totalorder %s1766, 3
        %s1768 = scalar_select %p1767, %s1766, 3
        %s1769 = scalar_lea.vmem %s8, %s1768
      $region80: #{dattention_forward.1} parent=75 // pred_fallthru
        _
      // Predicated region
      $region81: #{dattention_forward.1} parent=75 // pred_check
        %p1770 = pneg %p248
      $region82: #{dattention_forward.1} parent=75 // pred_check_branch
        %1772 = sbr.rel (%p1770) target = $region84
      $region83: #{dattention_forward.1} parent=75 // pred_region
        %p1773 = scmp.lt.s32.totalorder %s32, 1
        %s1774 = scalar_select %p1773, %s32, 1
        %s1775 = scalar_lea.vmem %s9, %s1774
      $region84: #{dattention_forward.1} parent=75 // pred_fallthru
        _
      // Predicated region
      $region85: #{dattention_forward.1} parent=75 // pred_check
        %p1776 = pneg %p274
      $region86: #{dattention_forward.1} parent=75 // pred_check_branch
        %1778 = sbr.rel (%p1776) target = $region88
      $region87: #{dattention_forward.1} parent=75 // pred_region
        %p1779 = scmp.lt.s32.totalorder %s32, 1
        %s1780 = scalar_select %p1779, %s32, 1
        %s1781 = scalar_lea.vmem %s10, %s1780
      $region88: #{dattention_forward.1} parent=75 // pred_fallthru
        _
      // Predicated region
      $region89: #{dattention_forward.1} parent=75 // pred_check
        %p1782 = pneg %p300
      $region90: #{dattention_forward.1} parent=75 // pred_check_branch
        %1784 = sbr.rel (%p1782) target = $region92
      $region91: #{dattention_forward.1} parent=75 // pred_region
        %p1785 = scmp.lt.s32.totalorder %s32, 1
        %s1786 = scalar_select %p1785, %s32, 1
        %s1787 = smul.addr %s1786, 4
        %s1788 = scalar_lea.vmem %s11, %s1787
      $region92: #{dattention_forward.1} parent=75 // pred_fallthru
        _
    $region76: #{dattention_forward.1} parent=5 // pred_fallthru
      _
  $region6: #{dattention_forward.1} parent=0 // loop_footer
    %s25 = sadd.s32 1, %s21
  $region7: #{dattention_forward.1} parent=0 // loop_footer_branch
    %20 = sbr.rel target = $region3
  $region8: #{dattention_forward.1} parent=0 // loop_exit
    _

</llo_original>
